<compile_context>
chip_gen: v6e
topology: v6e:2x2x1
jax: 0.10.0
libtpu: 0.0.40
codegen_flags: <defaults>
</compile_context>

<pallas_src>
import functools

import jax
import jax.numpy as jnp
from jax.experimental import pallas as pl
from jax.experimental.pallas import tpu as pltpu


def _round_up(x, m):
    return (x + m - 1) // m * m


def _tpu_vmem_capacity_bytes():
    """Physical VMEM per core; conservative fallback if the query is unavailable."""
    try:
        info = pltpu.get_tpu_info()
        return int(getattr(info, "vmem_capacity_bytes", 64 * 1024 * 1024))
    except Exception:
        return 64 * 1024 * 1024  # assume v7x-class (smallest VMEM) when unknown


def _conv_stats_kernel(col_ref, w_ref, conv_ref, stats_ref):
    """Pass 1 (fully parallel grid): conv tile via one lane-dense MXU dot + per-tile
    partial BN statistics.

    conv_ref : (TM, TN) bf16 staging slab tile.
    stats_ref: (8, TN) f32 block; row 0 = sum over the tile's rows, row 1 = sum of
               squares, rows 2..7 zero.  Finalized into scale/shift outside the kernel.
    Zero-padded M rows produce conv == 0 (no bias), so they contribute nothing to the
    statistics and no masking is needed.
    """
    conv = jnp.dot(col_ref[...], w_ref[...], preferred_element_type=jnp.float32)
    conv_ref[...] = conv.astype(conv_ref.dtype)

    stats_ref[...] = jnp.zeros_like(stats_ref)
    stats_ref[0:1, :] = jnp.sum(conv, axis=0, keepdims=True)
    stats_ref[1:2, :] = jnp.sum(conv * conv, axis=0, keepdims=True)


def _bn_apply_kernel(conv_ref, scale_ref, shift_ref, out_ref):
    """Pass 2 (fully parallel): y = conv * scale + shift with the folded BN affine."""
    out_ref[...] = (conv_ref[...].astype(jnp.float32) * scale_ref[...]
                    + shift_ref[...])


def conv_bn_forward(x_nchw, weight, bias, gamma, beta, *,
                    stride=1, padding=0, dilation=1, eps=1e-5):
    """ConvBN forward.  x_nchw: (N, Cin, H, W); weight: (Cout, Cin, KH, KW). Returns NCHW."""
    n, cin, h, w_in = x_nchw.shape
    cout, cin_w, kh, kw = weight.shape
    assert cin_w == cin, "grouped conv not supported"   # TODO(synk): groups > 1
    del bias  # conv bias cancels exactly under training-mode BatchNorm.

    sh = sw = int(stride)
    ph = pw = int(padding)
    dh = dw = int(dilation)

    h_out = (h + 2 * ph - dh * (kh - 1) - 1) // sh + 1
    w_out = (w_in + 2 * pw - dw * (kw - 1) - 1) // sw + 1
    m_true = n * h_out * w_out
    k_tot = kh * kw * cin
    k_pad = _round_up(k_tot, 128)        # vreg/MXU-aligned contraction depth

    # ---- generation-aware tiling ----
    vmem_phys = _tpu_vmem_capacity_bytes()
    big_vmem = vmem_phys > 64 * 1024 * 1024          # v5e/v6e: 128 MiB physical
    vmem_limit = (96 if big_vmem else 40) * 1024 * 1024

    cout_pad = _round_up(cout, 128)
    tn = 256 if cout_pad % 256 == 0 else 128
    num_n = cout_pad // tn

    tm_candidates = (1024, 512, 256, 128) if big_vmem else (512, 256, 128)
    tm = 128
    for cand in tm_candidates:
        # double-buffered pass-1 footprint: col(bf16) + w(bf16) + conv(bf16) + stats(f32)
        foot = 2 * (cand * k_pad * 2 + k_pad * tn * 2 + cand * tn * 2 + 8 * tn * 4)
        if foot <= int(0.6 * vmem_limit):
            tm = cand
            break
    tm = min(tm, _round_up(m_true, 256))             # don't over-pad tiny problems
    m_pad = _round_up(m_true, tm)
    num_m = m_pad // tm

    # ---- host-side layout glue (fused under jit): NCHW -> NHWC, pad, im2col ----
    # TODO(synk): for large activations move im2col into the kernel (DMA a
    # (rows+halo, W, Cin) strip and assemble col tiles in VMEM) to avoid this kh*kw x
    # activation blow-up in HBM.
    x_nhwc = jnp.transpose(x_nchw, (0, 2, 3, 1))
    x_pad = jnp.pad(x_nhwc, ((0, 0), (ph, ph), (pw, pw), (0, 0)))
    taps = []
    for i in range(kh):
        for j in range(kw):
            taps.append(x_pad[:,
                              i * dh:i * dh + (h_out - 1) * sh + 1:sh,
                              j * dw:j * dw + (w_out - 1) * sw + 1:sw,
                              :])
    # (M, KH*KW*Cin) in (i, j, cin) order -- matches the HWIO weight reshape below.
    col = jnp.concatenate(taps, axis=-1).reshape(m_true, k_tot)
    col = jnp.pad(col, ((0, m_pad - m_true), (0, k_pad - k_tot))).astype(jnp.bfloat16)

    w2d = jnp.transpose(weight, (2, 3, 1, 0)).reshape(k_tot, cout)
    w2d = jnp.pad(w2d, ((0, k_pad - k_tot), (0, cout_pad - cout))).astype(jnp.bfloat16)

    # ---- pass 1: conv slab (bf16) + per-m-tile partial BN statistics ----
    flops1 = 2 * m_pad * k_pad * cout_pad + 3 * m_pad * cout_pad
    bytes1 = (m_pad * k_pad * 2                      # col streamed once (m outer)
              + num_m * k_pad * cout_pad * 2         # small weight, re-read per m tile
              + m_pad * cout_pad * 2                 # bf16 conv slab store
              + 8 * num_m * cout_pad * 4)            # partial stats

    conv_slab, stats = pl.pallas_call(
        _conv_stats_kernel,
        grid_spec=pltpu.PrefetchScalarGridSpec(
            num_scalar_prefetch=0,
            grid=(num_m, num_n),                     # m outer -> col block constant over cn
            in_specs=[
                pl.BlockSpec((tm, k_pad), lambda cm, cn: (cm, 0)),
                pl.BlockSpec((k_pad, tn), lambda cm, cn: (0, cn)),
            ],
            out_specs=[
                pl.BlockSpec((tm, tn), lambda cm, cn: (cm, cn)),
                pl.BlockSpec((8, tn), lambda cm, cn: (cm, cn)),
            ],
        ),
        out_shape=[
            jax.ShapeDtypeStruct((m_pad, cout_pad), jnp.bfloat16),
            jax.ShapeDtypeStruct((8 * num_m, cout_pad), jnp.float32),
        ],
        compiler_params=pltpu.CompilerParams(
            dimension_semantics=("parallel", "parallel"),
            vmem_limit_bytes=vmem_limit),
        cost_estimate=pl.CostEstimate(
            flops=flops1, transcendentals=0, bytes_accessed=bytes1),
    )(col, w2d)

    # ---- tiny XLA finalize: fold batch stats + gamma/beta into per-channel affine ----
    stats3 = stats.reshape(num_m, 8, cout_pad)
    total_sum = jnp.sum(stats3[:, 0, :], axis=0)
    total_ssq = jnp.sum(stats3[:, 1, :], axis=0)
    inv_m = 1.0 / float(m_true)
    mean = total_sum * inv_m
    # E[x^2] - E[x]^2 in f32 (biased variance, PyTorch training BN).
    # TODO(synk): switch to a shifted/two-pass variance if activation magnitudes grow
    # large enough for cancellation to matter.
    var = jnp.maximum(total_ssq * inv_m - mean * mean, 0.0)
    rstd = jax.lax.rsqrt(var + float(eps))
    g_pad = jnp.pad(gamma.astype(jnp.float32), (0, cout_pad - cout))
    be_pad = jnp.pad(beta.astype(jnp.float32), (0, cout_pad - cout))
    scale = (g_pad * rstd).reshape(1, cout_pad)
    shift = (be_pad - mean * g_pad * rstd).reshape(1, cout_pad)

    # ---- pass 2: normalize with a large, independent M tile (HBM-roofline bound) ----
    tm2_cap = 2048
    f_max = max(1, tm2_cap // tm)
    f = 1
    for d in range(1, num_m + 1):
        if num_m % d == 0 and d <= f_max:
            f = d
    tm2 = tm * f
    num_m2 = num_m // f

    flops2 = 2 * m_pad * cout_pad
    bytes2 = m_pad * cout_pad * 2 + m_pad * cout_pad * 4 + 2 * cout_pad * 4

    y2d = pl.pallas_call(
        _bn_apply_kernel,
        grid_spec=pltpu.PrefetchScalarGridSpec(
            num_scalar_prefetch=0,
            grid=(num_m2, num_n),
            in_specs=[
                pl.BlockSpec((tm2, tn), lambda cm, cn: (cm, cn)),
                pl.BlockSpec((1, tn), lambda cm, cn: (0, cn)),
                pl.BlockSpec((1, tn), lambda cm, cn: (0, cn)),
            ],
            out_specs=pl.BlockSpec((tm2, tn), lambda cm, cn: (cm, cn)),
        ),
        out_shape=jax.ShapeDtypeStruct((m_pad, cout_pad), jnp.float32),
        compiler_params=pltpu.CompilerParams(
            dimension_semantics=("parallel", "parallel"),
            vmem_limit_bytes=vmem_limit),
        cost_estimate=pl.CostEstimate(
            flops=flops2, transcendentals=0, bytes_accessed=bytes2),
    )(conv_slab, scale, shift)
    # TODO(synk): alias the dead conv slab as the pass-2 output (input_output_aliases)
    # and emit bf16 once downstream accepts it; kept f32 here for output precision.

    # Back to PyTorch's NCHW convention.
    # TODO(synk): keep NHWC across layers (or fold the transpose into pass 2 via a
    # (Cout, M)-layout output) to avoid this extra full-tensor HBM pass.
    out_nhwc = y2d[:m_true, :cout].reshape(n, h_out, w_out, cout)
    return jnp.transpose(out_nhwc, (0, 3, 1, 2))


def _reference(x_nchw, weight, bias, gamma, beta, *, stride, padding, eps=1e-5):
    """Pure-JAX f32 reference (lax conv + bias + training-mode batch-stat BN)."""
    y = jax.lax.conv_general_dilated(
        x_nchw.astype(jnp.float32), weight.astype(jnp.float32),
        window_strides=(stride, stride),
        padding=((padding, padding), (padding, padding)),
        dimension_numbers=("NCHW", "OIHW", "NCHW"))
    y = y + bias.reshape(1, -1, 1, 1)
    mean = jnp.mean(y, axis=(0, 2, 3), keepdims=True)
    var = jnp.mean((y - mean) ** 2, axis=(0, 2, 3), keepdims=True)
    y = (y - mean) * jax.lax.rsqrt(var + eps)
    return y * gamma.reshape(1, -1, 1, 1) + beta.reshape(1, -1, 1, 1)


if __name__ == "__main__":
    # Small shapes consistent with the module: ConvBN(4, 8, kernel_size=3, stride=1, padding=1)
    N, CIN, H, W = 2, 4, 16, 16
    COUT, K, STRIDE, PAD = 8, 3, 1, 1

    key = jax.random.PRNGKey(0)
    kx, kwt, kb, kg, kbe = jax.random.split(key, 5)

    x = jax.random.normal(kx, (N, CIN, H, W), jnp.float32)
    weight = 0.1 * jax.random.normal(kwt, (COUT, CIN, K, K), jnp.float32)
    bias = 0.1 * jax.random.normal(kb, (COUT,), jnp.float32)
    gamma = 1.0 + 0.1 * jax.random.normal(kg, (COUT,), jnp.float32)
    beta = 0.1 * jax.random.normal(kbe, (COUT,), jnp.float32)

    fwd = jax.jit(functools.partial(conv_bn_forward, stride=STRIDE, padding=PAD))
    out = jax.block_until_ready(fwd(x, weight, bias, gamma, beta))

    ref = _reference(x, weight, bias, gamma, beta, stride=STRIDE, padding=PAD)
    h_out = (H + 2 * PAD - K) // STRIDE + 1
    w_out = (W + 2 * PAD - K) // STRIDE + 1
    assert out.shape == (N, COUT, h_out, w_out), f"bad shape {out.shape}"
    max_diff = float(jnp.max(jnp.abs(out - ref)))
    # bf16 MXU operands + bf16 staging slab (f32 accumulation/stats) vs the f32 reference.
    assert jnp.allclose(out, ref, rtol=2e-2, atol=2e-2), \
        f"mismatch vs JAX reference, max abs diff = {max_diff}"

    print("KERNEL_OK")
</pallas_src>

<mosaic_0001>
module attributes {stable_mosaic.version = 11 : i64} {
  func.func @_bn_apply_kernel(%arg0: i32, %arg1: i32, %arg2: memref<512x128xbf16, #tpu.memory_space<vmem>>, %arg3: memref<1x128xf32, #tpu.memory_space<vmem>>, %arg4: memref<1x128xf32, #tpu.memory_space<vmem>>, %arg5: memref<512x128xf32, #tpu.memory_space<vmem>>) attributes {dimension_semantics = [#tpu.dimension_semantics<parallel>, #tpu.dimension_semantics<parallel>], iteration_bounds = array<i64: 1, 1>, scalar_prefetch = 0 : i64, scratch_operands = 0 : i64, tpu.core_type = #tpu.core_type<tc>, window_params = [{transform_indices = @transform_0, window_bounds = array<i64: 512, 128>}, {transform_indices = @transform_1, window_bounds = array<i64: 1, 128>}, {transform_indices = @transform_2, window_bounds = array<i64: 1, 128>}, {transform_indices = @transform_3, window_bounds = array<i64: 512, 128>}]} {
    %c0 = arith.constant 0 : index
    %c0_0 = arith.constant 0 : index
    %0 = vector.load %arg2[%c0, %c0_0] : memref<512x128xbf16, #tpu.memory_space<vmem>>, vector<512x128xbf16>
    %1 = arith.extf %0 : vector<512x128xbf16> to vector<512x128xf32>
    %c0_1 = arith.constant 0 : index
    %c0_2 = arith.constant 0 : index
    %2 = vector.load %arg3[%c0_1, %c0_2] : memref<1x128xf32, #tpu.memory_space<vmem>>, vector<1x128xf32>
    %3 = vector.broadcast %2 : vector<1x128xf32> to vector<512x128xf32>
    %4 = arith.mulf %1, %3 : vector<512x128xf32>
    %c0_3 = arith.constant 0 : index
    %c0_4 = arith.constant 0 : index
    %5 = vector.load %arg4[%c0_3, %c0_4] : memref<1x128xf32, #tpu.memory_space<vmem>>, vector<1x128xf32>
    %6 = vector.broadcast %5 : vector<1x128xf32> to vector<512x128xf32>
    %7 = arith.addf %4, %6 : vector<512x128xf32>
    %c0_5 = arith.constant 0 : index
    %c0_6 = arith.constant 0 : index
    %8 = vector.load %arg5[%c0_5, %c0_6] : memref<512x128xf32, #tpu.memory_space<vmem>>, vector<512x128xf32>
    tpu.vector_store %arg5[%c0_5, %c0_6], %7 {strides = array<i32>} : memref<512x128xf32, #tpu.memory_space<vmem>>, vector<512x128xf32>,
    return
  }
  func.func @transform_0(%arg0: i32, %arg1: i32) -> (i32, i32) {
    %c0_i32 = arith.constant 0 : i32
    return %arg0, %arg1 : i32, i32
  }
  func.func @transform_1(%arg0: i32, %arg1: i32) -> (i32, i32) {
    %c0_i32 = arith.constant 0 : i32
    %c0_i32_0 = arith.constant 0 : i32
    return %c0_i32, %arg1 : i32, i32
  }
  func.func @transform_2(%arg0: i32, %arg1: i32) -> (i32, i32) {
    %c0_i32 = arith.constant 0 : i32
    %c0_i32_0 = arith.constant 0 : i32
    return %c0_i32, %arg1 : i32, i32
  }
  func.func @transform_3(%arg0: i32, %arg1: i32) -> (i32, i32) {
    %c0_i32 = arith.constant 0 : i32
    return %arg0, %arg1 : i32, i32
  }
}

module attributes {stable_mosaic.version = 11 : i64} {
  func.func @_conv_stats_kernel(%arg0: i32, %arg1: i32, %arg2: memref<512x128xbf16, #tpu.memory_space<vmem>>, %arg3: memref<128x128xbf16, #tpu.memory_space<vmem>>, %arg4: memref<512x128xbf16, #tpu.memory_space<vmem>>, %arg5: memref<8x128xf32, #tpu.memory_space<vmem>>) attributes {dimension_semantics = [#tpu.dimension_semantics<parallel>, #tpu.dimension_semantics<parallel>], iteration_bounds = array<i64: 1, 1>, scalar_prefetch = 0 : i64, scratch_operands = 0 : i64, tpu.core_type = #tpu.core_type<tc>, window_params = [{transform_indices = @transform_0, window_bounds = array<i64: 512, 128>}, {transform_indices = @transform_1, window_bounds = array<i64: 128, 128>}, {transform_indices = @transform_2, window_bounds = array<i64: 512, 128>}, {transform_indices = @transform_3, window_bounds = array<i64: 8, 128>}]} {
    %c0 = arith.constant 0 : index
    %c0_0 = arith.constant 0 : index
    %0 = vector.load %arg2[%c0, %c0_0] : memref<512x128xbf16, #tpu.memory_space<vmem>>, vector<512x128xbf16>
    %c0_1 = arith.constant 0 : index
    %c0_2 = arith.constant 0 : index
    %1 = vector.load %arg3[%c0_1, %c0_2] : memref<128x128xbf16, #tpu.memory_space<vmem>>, vector<128x128xbf16>
    %cst = arith.constant dense<0.000000e+00> : vector<512x128xf32>
    %2 = tpu.matmul %0, %1, %cst {dimension_numbers = #tpu.dot_dimension_numbers<[1], [0], [0], [1], [0, 0, 1, 1], [], []>} : vector<512x128xbf16>, vector<128x128xbf16>, vector<512x128xf32> -> vector<512x128xf32>
    %3 = arith.truncf %2 : vector<512x128xf32> to vector<512x128xbf16>
    %c0_3 = arith.constant 0 : index
    %c0_4 = arith.constant 0 : index
    %4 = vector.load %arg4[%c0_3, %c0_4] : memref<512x128xbf16, #tpu.memory_space<vmem>>, vector<512x128xbf16>
    tpu.vector_store %arg4[%c0_3, %c0_4], %3 {strides = array<i32>} : memref<512x128xbf16, #tpu.memory_space<vmem>>, vector<512x128xbf16>,
    %cst_5 = arith.constant 0.000000e+00 : f32
    %5 = vector.broadcast %cst_5 : f32 to vector<8x128xf32>
    %c0_6 = arith.constant 0 : index
    %c0_7 = arith.constant 0 : index
    %6 = vector.load %arg5[%c0_6, %c0_7] : memref<8x128xf32, #tpu.memory_space<vmem>>, vector<8x128xf32>
    tpu.vector_store %arg5[%c0_6, %c0_7], %5 {strides = array<i32>} : memref<8x128xf32, #tpu.memory_space<vmem>>, vector<8x128xf32>,
    %cst_8 = arith.constant dense<0.000000e+00> : vector<128xf32>
    %7 = vector.multi_reduction <add>, %2, %cst_8 [0] : vector<512x128xf32> to vector<128xf32>
    %8 = vector.shape_cast %7 : vector<128xf32> to vector<1x128xf32>
    %c0_9 = arith.constant 0 : index
    %c0_10 = arith.constant 0 : index
    %9 = vector.load %arg5[%c0_9, %c0_10] : memref<8x128xf32, #tpu.memory_space<vmem>>, vector<1x128xf32>
    tpu.vector_store %arg5[%c0_9, %c0_10], %8 {strides = array<i32>} : memref<8x128xf32, #tpu.memory_space<vmem>>, vector<1x128xf32>,
    %10 = arith.mulf %2, %2 : vector<512x128xf32>
    %cst_11 = arith.constant dense<0.000000e+00> : vector<128xf32>
    %11 = vector.multi_reduction <add>, %10, %cst_11 [0] : vector<512x128xf32> to vector<128xf32>
    %12 = vector.shape_cast %11 : vector<128xf32> to vector<1x128xf32>
    %c1 = arith.constant 1 : index
    %c0_12 = arith.constant 0 : index
    %13 = vector.load %arg5[%c1, %c0_12] : memref<8x128xf32, #tpu.memory_space<vmem>>, vector<1x128xf32>
    tpu.vector_store %arg5[%c1, %c0_12], %12 {strides = array<i32>} : memref<8x128xf32, #tpu.memory_space<vmem>>, vector<1x128xf32>,
    return
  }
  func.func @transform_0(%arg0: i32, %arg1: i32) -> (i32, i32) {
    %c0_i32 = arith.constant 0 : i32
    %c0_i32_0 = arith.constant 0 : i32
    return %arg0, %c0_i32 : i32, i32
  }
  func.func @transform_1(%arg0: i32, %arg1: i32) -> (i32, i32) {
    %c0_i32 = arith.constant 0 : i32
    %c0_i32_0 = arith.constant 0 : i32
    return %c0_i32, %arg1 : i32, i32
  }
  func.func @transform_2(%arg0: i32, %arg1: i32) -> (i32, i32) {
    %c0_i32 = arith.constant 0 : i32
    return %arg0, %arg1 : i32, i32
  }
  func.func @transform_3(%arg0: i32, %arg1: i32) -> (i32, i32) {
    %c0_i32 = arith.constant 0 : i32
    return %arg0, %arg1 : i32, i32
  }
}

</mosaic_0001>

<llo_original>
// kernel: conv_bn_forward.3
$region0: #{conv_bn_forward.3}
  #allocation0 [shape = 'u32[]', space=smem, size = 0x4, offset = 0x4, fixed_abs, tag = 'smem constant byte address 0x4 - core index']
  #allocation1 [shape = 'u32[144,128]{1,0:T(1,128)}', space=vmem, size = 0x12000, scoped, tag = 'internal scratch']
  %s0 = inlined_call_operand.vmem [shape: bf16[512,128], index: 0, kind: input, shape index: {}]
  %s1 = inlined_call_operand.vmem [shape: f32[1,128], index: 1, kind: input, shape index: {}]
  %s2 = inlined_call_operand.vmem [shape: f32[1,128], index: 2, kind: input, shape index: {}]
  %s3 = inlined_call_operand.vmem [shape: f32[512,128], index: 3, kind: output, shape index: {}]
  %s4 = sld [smem:[#allocation0]]
  $region22: #{conv_bn_forward.3} parent=0
    _
  %s6 = ssub.s32 1, %s4
  %s7 = scalar_select 0, %s6, %s4
  // Predicated region
  $region2: #{conv_bn_forward.3} parent=0 // pred_check
    _
  $region3: #{conv_bn_forward.3} parent=0 // pred_check_branch
    %9 = sbr.rel (0) target = $region5
  $region4: #{conv_bn_forward.3} parent=0 // pred_region
    _
  $region5: #{conv_bn_forward.3} parent=0 // pred_fallthru
    _
  // Predicated region
  $region6: #{conv_bn_forward.3} parent=0 // pred_check
    _
  $region7: #{conv_bn_forward.3} parent=0 // pred_check_branch
    %11 = sbr.rel (0) target = $region9
  $region8: #{conv_bn_forward.3} parent=0 // pred_region
    _
  $region9: #{conv_bn_forward.3} parent=0 // pred_fallthru
    _
  // Predicated region
  $region10: #{conv_bn_forward.3} parent=0 // pred_check
    _
  $region11: #{conv_bn_forward.3} parent=0 // pred_check_branch
    %13 = sbr.rel (0) target = $region13
  $region12: #{conv_bn_forward.3} parent=0 // pred_region
    _
  $region13: #{conv_bn_forward.3} parent=0 // pred_fallthru
    _
  %v14 = vld [vmem:[%s0] sm:$0xf]
  %v15 = vld [vmem:[%s0 + $0x4] sm:$0xf]
  %v16 = vld [vmem:[%s0 + $0x8] sm:$0xf]
  %v17 = vld [vmem:[%s0 + $0xc] sm:$0xf]
  %v18 = vld [vmem:[%s0 + $0x10] sm:$0xf]
  %v19 = vld [vmem:[%s0 + $0x14] sm:$0xf]
  %v20 = vld [vmem:[%s0 + $0x18] sm:$0xf]
  %v21 = vld [vmem:[%s0 + $0x1c] sm:$0xf]
  %v22 = vld [vmem:[%s0 + $0x20] sm:$0xf]
  %v23 = vld [vmem:[%s0 + $0x24] sm:$0xf]
  %v24 = vld [vmem:[%s0 + $0x28] sm:$0xf]
  %v25 = vld [vmem:[%s0 + $0x2c] sm:$0xf]
  %v26 = vld [vmem:[%s0 + $0x30] sm:$0xf]
  %v27 = vld [vmem:[%s0 + $0x34] sm:$0xf]
  %v28 = vld [vmem:[%s0 + $0x38] sm:$0xf]
  %v29 = vld [vmem:[%s0 + $0x3c] sm:$0xf]
  %v30 = vld [vmem:[%s0 + $0x40] sm:$0xf]
  %v31 = vld [vmem:[%s0 + $0x44] sm:$0xf]
  %v32 = vld [vmem:[%s0 + $0x48] sm:$0xf]
  %v33 = vld [vmem:[%s0 + $0x4c] sm:$0xf]
  %v34 = vld [vmem:[%s0 + $0x50] sm:$0xf]
  %v35 = vld [vmem:[%s0 + $0x54] sm:$0xf]
  %v36 = vld [vmem:[%s0 + $0x58] sm:$0xf]
  %v37 = vld [vmem:[%s0 + $0x5c] sm:$0xf]
  %v38 = vld [vmem:[%s0 + $0x60] sm:$0xf]
  %v39 = vld [vmem:[%s0 + $0x64] sm:$0xf]
  %v40 = vld [vmem:[%s0 + $0x68] sm:$0xf]
  %v41 = vld [vmem:[%s0 + $0x6c] sm:$0xf]
  %v42 = vld [vmem:[%s0 + $0x70] sm:$0xf]
  %v43 = vld [vmem:[%s0 + $0x74] sm:$0xf]
  %v44 = vld [vmem:[%s0 + $0x78] sm:$0xf]
  %v45 = vld [vmem:[%s0 + $0x7c] sm:$0xf]
  %v46 = vld [vmem:[%s0 + $0x80] sm:$0xf]
  %v47 = vld [vmem:[%s0 + $0x84] sm:$0xf]
  %v48 = vld [vmem:[%s0 + $0x88] sm:$0xf]
  %v49 = vld [vmem:[%s0 + $0x8c] sm:$0xf]
  %v50 = vld [vmem:[%s0 + $0x90] sm:$0xf]
  %v51 = vld [vmem:[%s0 + $0x94] sm:$0xf]
  %v52 = vld [vmem:[%s0 + $0x98] sm:$0xf]
  %v53 = vld [vmem:[%s0 + $0x9c] sm:$0xf]
  %v54 = vld [vmem:[%s0 + $0xa0] sm:$0xf]
  %v55 = vld [vmem:[%s0 + $0xa4] sm:$0xf]
  %v56 = vld [vmem:[%s0 + $0xa8] sm:$0xf]
  %v57 = vld [vmem:[%s0 + $0xac] sm:$0xf]
  %v58 = vld [vmem:[%s0 + $0xb0] sm:$0xf]
  %v59 = vld [vmem:[%s0 + $0xb4] sm:$0xf]
  %v60 = vld [vmem:[%s0 + $0xb8] sm:$0xf]
  %v61 = vld [vmem:[%s0 + $0xbc] sm:$0xf]
  %v62 = vld [vmem:[%s0 + $0xc0] sm:$0xf]
  %v63 = vld [vmem:[%s0 + $0xc4] sm:$0xf]
  %v64 = vld [vmem:[%s0 + $0xc8] sm:$0xf]
  %v65 = vld [vmem:[%s0 + $0xcc] sm:$0xf]
  %v66 = vld [vmem:[%s0 + $0xd0] sm:$0xf]
  %v67 = vld [vmem:[%s0 + $0xd4] sm:$0xf]
  %v68 = vld [vmem:[%s0 + $0xd8] sm:$0xf]
  %v69 = vld [vmem:[%s0 + $0xdc] sm:$0xf]
  %v70 = vld [vmem:[%s0 + $0xe0] sm:$0xf]
  %v71 = vld [vmem:[%s0 + $0xe4] sm:$0xf]
  %v72 = vld [vmem:[%s0 + $0xe8] sm:$0xf]
  %v73 = vld [vmem:[%s0 + $0xec] sm:$0xf]
  %v74 = vld [vmem:[%s0 + $0xf0] sm:$0xf]
  %v75 = vld [vmem:[%s0 + $0xf4] sm:$0xf]
  %v76 = vld [vmem:[%s0 + $0xf8] sm:$0xf]
  %v77 = vld [vmem:[%s0 + $0xfc] sm:$0xf]
  %v78 = vunpack.c.l.bf16 %v14
  %v79 = vunpack.c.l.bf16 %v15
  %v80 = vunpack.c.l.bf16 %v16
  %v81 = vunpack.c.l.bf16 %v17
  %v82 = vunpack.c.l.bf16 %v18
  %v83 = vunpack.c.l.bf16 %v19
  %v84 = vunpack.c.l.bf16 %v20
  %v85 = vunpack.c.l.bf16 %v21
  %v86 = vunpack.c.l.bf16 %v22
  %v87 = vunpack.c.l.bf16 %v23
  %v88 = vunpack.c.l.bf16 %v24
  %v89 = vunpack.c.l.bf16 %v25
  %v90 = vunpack.c.l.bf16 %v26
  %v91 = vunpack.c.l.bf16 %v27
  %v92 = vunpack.c.l.bf16 %v28
  %v93 = vunpack.c.l.bf16 %v29
  %v94 = vunpack.c.l.bf16 %v30
  %v95 = vunpack.c.l.bf16 %v31
  %v96 = vunpack.c.l.bf16 %v32
  %v97 = vunpack.c.l.bf16 %v33
  %v98 = vunpack.c.l.bf16 %v34
  %v99 = vunpack.c.l.bf16 %v35
  %v100 = vunpack.c.l.bf16 %v36
  %v101 = vunpack.c.l.bf16 %v37
  %v102 = vunpack.c.l.bf16 %v38
  %v103 = vunpack.c.l.bf16 %v39
  %v104 = vunpack.c.l.bf16 %v40
  %v105 = vunpack.c.l.bf16 %v41
  %v106 = vunpack.c.l.bf16 %v42
  %v107 = vunpack.c.l.bf16 %v43
  %v108 = vunpack.c.l.bf16 %v44
  %v109 = vunpack.c.l.bf16 %v45
  %v110 = vunpack.c.l.bf16 %v46
  %v111 = vunpack.c.l.bf16 %v47
  %v112 = vunpack.c.l.bf16 %v48
  %v113 = vunpack.c.l.bf16 %v49
  %v114 = vunpack.c.l.bf16 %v50
  %v115 = vunpack.c.l.bf16 %v51
  %v116 = vunpack.c.l.bf16 %v52
  %v117 = vunpack.c.l.bf16 %v53
  %v118 = vunpack.c.l.bf16 %v54
  %v119 = vunpack.c.l.bf16 %v55
  %v120 = vunpack.c.l.bf16 %v56
  %v121 = vunpack.c.l.bf16 %v57
  %v122 = vunpack.c.l.bf16 %v58
  %v123 = vunpack.c.l.bf16 %v59
  %v124 = vunpack.c.l.bf16 %v60
  %v125 = vunpack.c.l.bf16 %v61
  %v126 = vunpack.c.l.bf16 %v62
  %v127 = vunpack.c.l.bf16 %v63
  %v128 = vunpack.c.l.bf16 %v64
  %v129 = vunpack.c.l.bf16 %v65
  %v130 = vunpack.c.l.bf16 %v66
  %v131 = vunpack.c.l.bf16 %v67
  %v132 = vunpack.c.l.bf16 %v68
  %v133 = vunpack.c.l.bf16 %v69
  %v134 = vunpack.c.l.bf16 %v70
  %v135 = vunpack.c.l.bf16 %v71
  %v136 = vunpack.c.l.bf16 %v72
  %v137 = vunpack.c.l.bf16 %v73
  %v138 = vunpack.c.l.bf16 %v74
  %v139 = vunpack.c.l.bf16 %v75
  %v140 = vunpack.c.l.bf16 %v76
  %v141 = vunpack.c.l.bf16 %v77
  %v142 = vld [vmem:[%s1] sm:$0x1]
  %v144 = vlaneseq
  %v145 = vshrl.u32 %v144, 7
  %v146 = vsub.s32 0, %v145
  %v147 = vrot.slane %v142, %v146
  %v149 = vmul.f32 %v78, %v147
  %v150 = vmul.f32 %v79, %v147
  %v151 = vmul.f32 %v80, %v147
  %v152 = vmul.f32 %v81, %v147
  %v153 = vmul.f32 %v82, %v147
  %v154 = vmul.f32 %v83, %v147
  %v155 = vmul.f32 %v84, %v147
  %v156 = vmul.f32 %v85, %v147
  %v157 = vmul.f32 %v86, %v147
  %v158 = vmul.f32 %v87, %v147
  %v159 = vmul.f32 %v88, %v147
  %v160 = vmul.f32 %v89, %v147
  %v161 = vmul.f32 %v90, %v147
  %v162 = vmul.f32 %v91, %v147
  %v163 = vmul.f32 %v92, %v147
  %v164 = vmul.f32 %v93, %v147
  %v165 = vmul.f32 %v94, %v147
  %v166 = vmul.f32 %v95, %v147
  %v167 = vmul.f32 %v96, %v147
  %v168 = vmul.f32 %v97, %v147
  %v169 = vmul.f32 %v98, %v147
  %v170 = vmul.f32 %v99, %v147
  %v171 = vmul.f32 %v100, %v147
  %v172 = vmul.f32 %v101, %v147
  %v173 = vmul.f32 %v102, %v147
  %v174 = vmul.f32 %v103, %v147
  %v175 = vmul.f32 %v104, %v147
  %v176 = vmul.f32 %v105, %v147
  %v177 = vmul.f32 %v106, %v147
  %v178 = vmul.f32 %v107, %v147
  %v179 = vmul.f32 %v108, %v147
  %v180 = vmul.f32 %v109, %v147
  %v181 = vmul.f32 %v110, %v147
  %v182 = vmul.f32 %v111, %v147
  %v183 = vmul.f32 %v112, %v147
  %v184 = vmul.f32 %v113, %v147
  %v185 = vmul.f32 %v114, %v147
  %v186 = vmul.f32 %v115, %v147
  %v187 = vmul.f32 %v116, %v147
  %v188 = vmul.f32 %v117, %v147
  %v189 = vmul.f32 %v118, %v147
  %v190 = vmul.f32 %v119, %v147
  %v191 = vmul.f32 %v120, %v147
  %v192 = vmul.f32 %v121, %v147
  %v193 = vmul.f32 %v122, %v147
  %v194 = vmul.f32 %v123, %v147
  %v195 = vmul.f32 %v124, %v147
  %v196 = vmul.f32 %v125, %v147
  %v197 = vmul.f32 %v126, %v147
  %v198 = vmul.f32 %v127, %v147
  %v199 = vmul.f32 %v128, %v147
  %v200 = vmul.f32 %v129, %v147
  %v201 = vmul.f32 %v130, %v147
  %v202 = vmul.f32 %v131, %v147
  %v203 = vmul.f32 %v132, %v147
  %v204 = vmul.f32 %v133, %v147
  %v205 = vmul.f32 %v134, %v147
  %v206 = vmul.f32 %v135, %v147
  %v207 = vmul.f32 %v136, %v147
  %v208 = vmul.f32 %v137, %v147
  %v209 = vmul.f32 %v138, %v147
  %v210 = vmul.f32 %v139, %v147
  %v211 = vmul.f32 %v140, %v147
  %v212 = vmul.f32 %v141, %v147
  %v213 = vld [vmem:[%s2] sm:$0x1]
  %v215 = vlaneseq
  %v216 = vshrl.u32 %v215, 7
  %v217 = vsub.s32 0, %v216
  %v218 = vrot.slane %v213, %v217
  %v220 = vadd.f32 %v149, %v218
  %v221 = vadd.f32 %v150, %v218
  %v222 = vadd.f32 %v151, %v218
  %v223 = vadd.f32 %v152, %v218
  %v224 = vadd.f32 %v153, %v218
  %v225 = vadd.f32 %v154, %v218
  %v226 = vadd.f32 %v155, %v218
  %v227 = vadd.f32 %v156, %v218
  %v228 = vadd.f32 %v157, %v218
  %v229 = vadd.f32 %v158, %v218
  %v230 = vadd.f32 %v159, %v218
  %v231 = vadd.f32 %v160, %v218
  %v232 = vadd.f32 %v161, %v218
  %v233 = vadd.f32 %v162, %v218
  %v234 = vadd.f32 %v163, %v218
  %v235 = vadd.f32 %v164, %v218
  %v236 = vadd.f32 %v165, %v218
  %v237 = vadd.f32 %v166, %v218
  %v238 = vadd.f32 %v167, %v218
  %v239 = vadd.f32 %v168, %v218
  %v240 = vadd.f32 %v169, %v218
  %v241 = vadd.f32 %v170, %v218
  %v242 = vadd.f32 %v171, %v218
  %v243 = vadd.f32 %v172, %v218
  %v244 = vadd.f32 %v173, %v218
  %v245 = vadd.f32 %v174, %v218
  %v246 = vadd.f32 %v175, %v218
  %v247 = vadd.f32 %v176, %v218
  %v248 = vadd.f32 %v177, %v218
  %v249 = vadd.f32 %v178, %v218
  %v250 = vadd.f32 %v179, %v218
  %v251 = vadd.f32 %v180, %v218
  %v252 = vadd.f32 %v181, %v218
  %v253 = vadd.f32 %v182, %v218
  %v254 = vadd.f32 %v183, %v218
  %v255 = vadd.f32 %v184, %v218
  %v256 = vadd.f32 %v185, %v218
  %v257 = vadd.f32 %v186, %v218
  %v258 = vadd.f32 %v187, %v218
  %v259 = vadd.f32 %v188, %v218
  %v260 = vadd.f32 %v189, %v218
  %v261 = vadd.f32 %v190, %v218
  %v262 = vadd.f32 %v191, %v218
  %v263 = vadd.f32 %v192, %v218
  %v264 = vadd.f32 %v193, %v218
  %v265 = vadd.f32 %v194, %v218
  %v266 = vadd.f32 %v195, %v218
  %v267 = vadd.f32 %v196, %v218
  %v268 = vadd.f32 %v197, %v218
  %v269 = vadd.f32 %v198, %v218
  %v270 = vadd.f32 %v199, %v218
  %v271 = vadd.f32 %v200, %v218
  %v272 = vadd.f32 %v201, %v218
  %v273 = vadd.f32 %v202, %v218
  %v274 = vadd.f32 %v203, %v218
  %v275 = vadd.f32 %v204, %v218
  %v276 = vadd.f32 %v205, %v218
  %v277 = vadd.f32 %v206, %v218
  %v278 = vadd.f32 %v207, %v218
  %v279 = vadd.f32 %v208, %v218
  %v280 = vadd.f32 %v209, %v218
  %v281 = vadd.f32 %v210, %v218
  %v282 = vadd.f32 %v211, %v218
  %v283 = vadd.f32 %v212, %v218
  %284 = vst [vmem:[%s3] sm:$0xff] %v220
  %285 = vst [vmem:[%s3 + $0x8] sm:$0xff] %v221
  %286 = vst [vmem:[%s3 + $0x10] sm:$0xff] %v222
  %287 = vst [vmem:[%s3 + $0x18] sm:$0xff] %v223
  %288 = vst [vmem:[%s3 + $0x20] sm:$0xff] %v224
  %289 = vst [vmem:[%s3 + $0x28] sm:$0xff] %v225
  %290 = vst [vmem:[%s3 + $0x30] sm:$0xff] %v226
  %291 = vst [vmem:[%s3 + $0x38] sm:$0xff] %v227
  %292 = vst [vmem:[%s3 + $0x40] sm:$0xff] %v228
  %293 = vst [vmem:[%s3 + $0x48] sm:$0xff] %v229
  %294 = vst [vmem:[%s3 + $0x50] sm:$0xff] %v230
  %295 = vst [vmem:[%s3 + $0x58] sm:$0xff] %v231
  %296 = vst [vmem:[%s3 + $0x60] sm:$0xff] %v232
  %297 = vst [vmem:[%s3 + $0x68] sm:$0xff] %v233
  %298 = vst [vmem:[%s3 + $0x70] sm:$0xff] %v234
  %299 = vst [vmem:[%s3 + $0x78] sm:$0xff] %v235
  %300 = vst [vmem:[%s3 + $0x80] sm:$0xff] %v236
  %301 = vst [vmem:[%s3 + $0x88] sm:$0xff] %v237
  %302 = vst [vmem:[%s3 + $0x90] sm:$0xff] %v238
  %303 = vst [vmem:[%s3 + $0x98] sm:$0xff] %v239
  %304 = vst [vmem:[%s3 + $0xa0] sm:$0xff] %v240
  %305 = vst [vmem:[%s3 + $0xa8] sm:$0xff] %v241
  %306 = vst [vmem:[%s3 + $0xb0] sm:$0xff] %v242
  %307 = vst [vmem:[%s3 + $0xb8] sm:$0xff] %v243
  %308 = vst [vmem:[%s3 + $0xc0] sm:$0xff] %v244
  %309 = vst [vmem:[%s3 + $0xc8] sm:$0xff] %v245
  %310 = vst [vmem:[%s3 + $0xd0] sm:$0xff] %v246
  %311 = vst [vmem:[%s3 + $0xd8] sm:$0xff] %v247
  %312 = vst [vmem:[%s3 + $0xe0] sm:$0xff] %v248
  %313 = vst [vmem:[%s3 + $0xe8] sm:$0xff] %v249
  %314 = vst [vmem:[%s3 + $0xf0] sm:$0xff] %v250
  %315 = vst [vmem:[%s3 + $0xf8] sm:$0xff] %v251
  %316 = vst [vmem:[%s3 + $0x100] sm:$0xff] %v252
  %317 = vst [vmem:[%s3 + $0x108] sm:$0xff] %v253
  %318 = vst [vmem:[%s3 + $0x110] sm:$0xff] %v254
  %319 = vst [vmem:[%s3 + $0x118] sm:$0xff] %v255
  %320 = vst [vmem:[%s3 + $0x120] sm:$0xff] %v256
  %321 = vst [vmem:[%s3 + $0x128] sm:$0xff] %v257
  %322 = vst [vmem:[%s3 + $0x130] sm:$0xff] %v258
  %323 = vst [vmem:[%s3 + $0x138] sm:$0xff] %v259
  %324 = vst [vmem:[%s3 + $0x140] sm:$0xff] %v260
  %325 = vst [vmem:[%s3 + $0x148] sm:$0xff] %v261
  %326 = vst [vmem:[%s3 + $0x150] sm:$0xff] %v262
  %327 = vst [vmem:[%s3 + $0x158] sm:$0xff] %v263
  %328 = vst [vmem:[%s3 + $0x160] sm:$0xff] %v264
  %329 = vst [vmem:[%s3 + $0x168] sm:$0xff] %v265
  %330 = vst [vmem:[%s3 + $0x170] sm:$0xff] %v266
  %331 = vst [vmem:[%s3 + $0x178] sm:$0xff] %v267
  %332 = vst [vmem:[%s3 + $0x180] sm:$0xff] %v268
  %333 = vst [vmem:[%s3 + $0x188] sm:$0xff] %v269
  %334 = vst [vmem:[%s3 + $0x190] sm:$0xff] %v270
  %335 = vst [vmem:[%s3 + $0x198] sm:$0xff] %v271
  %336 = vst [vmem:[%s3 + $0x1a0] sm:$0xff] %v272
  %337 = vst [vmem:[%s3 + $0x1a8] sm:$0xff] %v273
  %338 = vst [vmem:[%s3 + $0x1b0] sm:$0xff] %v274
  %339 = vst [vmem:[%s3 + $0x1b8] sm:$0xff] %v275
  %340 = vst [vmem:[%s3 + $0x1c0] sm:$0xff] %v276
  %341 = vst [vmem:[%s3 + $0x1c8] sm:$0xff] %v277
  %342 = vst [vmem:[%s3 + $0x1d0] sm:$0xff] %v278
  %343 = vst [vmem:[%s3 + $0x1d8] sm:$0xff] %v279
  %344 = vst [vmem:[%s3 + $0x1e0] sm:$0xff] %v280
  %345 = vst [vmem:[%s3 + $0x1e8] sm:$0xff] %v281
  %346 = vst [vmem:[%s3 + $0x1f0] sm:$0xff] %v282
  %347 = vst [vmem:[%s3 + $0x1f8] sm:$0xff] %v283
  // Predicated region
  $region14: #{conv_bn_forward.3} parent=0 // pred_check
    _
  $region15: #{conv_bn_forward.3} parent=0 // pred_check_branch
    %349 = sbr.rel (0) target = $region17
  $region16: #{conv_bn_forward.3} parent=0 // pred_region
    _
  $region17: #{conv_bn_forward.3} parent=0 // pred_fallthru
    _
  // Predicated region
  $region18: #{conv_bn_forward.3} parent=0 // pred_check
    _
  $region19: #{conv_bn_forward.3} parent=0 // pred_check_branch
    %351 = sbr.rel (0) target = $region21
  $region20: #{conv_bn_forward.3} parent=0 // pred_region
    _
  $region21: #{conv_bn_forward.3} parent=0 // pred_fallthru
    _

// kernel: conv_bn_forward.2
$region0: #{conv_bn_forward.2}
  #allocation0 [shape = 'u32[]', space=smem, size = 0x4, offset = 0x4, fixed_abs, tag = 'smem constant byte address 0x4 - core index']
  #allocation1 [shape = 'u32[144,128]{1,0:T(1,128)}', space=vmem, size = 0x12000, scoped, tag = 'internal scratch']
  %s0 = inlined_call_operand.vmem [shape: bf16[512,128], index: 0, kind: input, shape index: {}]
  %s1 = inlined_call_operand.vmem [shape: bf16[128,128], index: 1, kind: input, shape index: {}]
  %s2 = inlined_call_operand.vmem [shape: bf16[512,128], index: 2, kind: output, shape index: {0}]
  %s3 = inlined_call_operand.vmem [shape: f32[8,128], index: 3, kind: output, shape index: {1}]
  %4 = xla_tuple %s2, %s3
  %s5 = sld [smem:[#allocation0]]
  $region26: #{conv_bn_forward.2} parent=0
    _
  %s7 = ssub.s32 1, %s5
  %s8 = scalar_select 0, %s7, %s5
  // Predicated region
  $region2: #{conv_bn_forward.2} parent=0 // pred_check
    _
  $region3: #{conv_bn_forward.2} parent=0 // pred_check_branch
    %10 = sbr.rel (0) target = $region5
  $region4: #{conv_bn_forward.2} parent=0 // pred_region
    _
  $region5: #{conv_bn_forward.2} parent=0 // pred_fallthru
    _
  // Predicated region
  $region6: #{conv_bn_forward.2} parent=0 // pred_check
    _
  $region7: #{conv_bn_forward.2} parent=0 // pred_check_branch
    %12 = sbr.rel (0) target = $region9
  $region8: #{conv_bn_forward.2} parent=0 // pred_region
    _
  $region9: #{conv_bn_forward.2} parent=0 // pred_fallthru
    _
  %v14 = vld [vmem:[%s0] sm:$0xf]
  %v15 = vld [vmem:[%s0 + $0x4] sm:$0xf]
  %v16 = vld [vmem:[%s0 + $0x8] sm:$0xf]
  %v17 = vld [vmem:[%s0 + $0xc] sm:$0xf]
  %v18 = vld [vmem:[%s0 + $0x10] sm:$0xf]
  %v19 = vld [vmem:[%s0 + $0x14] sm:$0xf]
  %v20 = vld [vmem:[%s0 + $0x18] sm:$0xf]
  %v21 = vld [vmem:[%s0 + $0x1c] sm:$0xf]
  %v22 = vld [vmem:[%s0 + $0x20] sm:$0xf]
  %v23 = vld [vmem:[%s0 + $0x24] sm:$0xf]
  %v24 = vld [vmem:[%s0 + $0x28] sm:$0xf]
  %v25 = vld [vmem:[%s0 + $0x2c] sm:$0xf]
  %v26 = vld [vmem:[%s0 + $0x30] sm:$0xf]
  %v27 = vld [vmem:[%s0 + $0x34] sm:$0xf]
  %v28 = vld [vmem:[%s0 + $0x38] sm:$0xf]
  %v29 = vld [vmem:[%s0 + $0x3c] sm:$0xf]
  %v30 = vld [vmem:[%s0 + $0x40] sm:$0xf]
  %v31 = vld [vmem:[%s0 + $0x44] sm:$0xf]
  %v32 = vld [vmem:[%s0 + $0x48] sm:$0xf]
  %v33 = vld [vmem:[%s0 + $0x4c] sm:$0xf]
  %v34 = vld [vmem:[%s0 + $0x50] sm:$0xf]
  %v35 = vld [vmem:[%s0 + $0x54] sm:$0xf]
  %v36 = vld [vmem:[%s0 + $0x58] sm:$0xf]
  %v37 = vld [vmem:[%s0 + $0x5c] sm:$0xf]
  %v38 = vld [vmem:[%s0 + $0x60] sm:$0xf]
  %v39 = vld [vmem:[%s0 + $0x64] sm:$0xf]
  %v40 = vld [vmem:[%s0 + $0x68] sm:$0xf]
  %v41 = vld [vmem:[%s0 + $0x6c] sm:$0xf]
  %v42 = vld [vmem:[%s0 + $0x70] sm:$0xf]
  %v43 = vld [vmem:[%s0 + $0x74] sm:$0xf]
  %v44 = vld [vmem:[%s0 + $0x78] sm:$0xf]
  %v45 = vld [vmem:[%s0 + $0x7c] sm:$0xf]
  %v46 = vld [vmem:[%s0 + $0x80] sm:$0xf]
  %v47 = vld [vmem:[%s0 + $0x84] sm:$0xf]
  %v48 = vld [vmem:[%s0 + $0x88] sm:$0xf]
  %v49 = vld [vmem:[%s0 + $0x8c] sm:$0xf]
  %v50 = vld [vmem:[%s0 + $0x90] sm:$0xf]
  %v51 = vld [vmem:[%s0 + $0x94] sm:$0xf]
  %v52 = vld [vmem:[%s0 + $0x98] sm:$0xf]
  %v53 = vld [vmem:[%s0 + $0x9c] sm:$0xf]
  %v54 = vld [vmem:[%s0 + $0xa0] sm:$0xf]
  %v55 = vld [vmem:[%s0 + $0xa4] sm:$0xf]
  %v56 = vld [vmem:[%s0 + $0xa8] sm:$0xf]
  %v57 = vld [vmem:[%s0 + $0xac] sm:$0xf]
  %v58 = vld [vmem:[%s0 + $0xb0] sm:$0xf]
  %v59 = vld [vmem:[%s0 + $0xb4] sm:$0xf]
  %v60 = vld [vmem:[%s0 + $0xb8] sm:$0xf]
  %v61 = vld [vmem:[%s0 + $0xbc] sm:$0xf]
  %v62 = vld [vmem:[%s0 + $0xc0] sm:$0xf]
  %v63 = vld [vmem:[%s0 + $0xc4] sm:$0xf]
  %v64 = vld [vmem:[%s0 + $0xc8] sm:$0xf]
  %v65 = vld [vmem:[%s0 + $0xcc] sm:$0xf]
  %v66 = vld [vmem:[%s0 + $0xd0] sm:$0xf]
  %v67 = vld [vmem:[%s0 + $0xd4] sm:$0xf]
  %v68 = vld [vmem:[%s0 + $0xd8] sm:$0xf]
  %v69 = vld [vmem:[%s0 + $0xdc] sm:$0xf]
  %v70 = vld [vmem:[%s0 + $0xe0] sm:$0xf]
  %v71 = vld [vmem:[%s0 + $0xe4] sm:$0xf]
  %v72 = vld [vmem:[%s0 + $0xe8] sm:$0xf]
  %v73 = vld [vmem:[%s0 + $0xec] sm:$0xf]
  %v74 = vld [vmem:[%s0 + $0xf0] sm:$0xf]
  %v75 = vld [vmem:[%s0 + $0xf4] sm:$0xf]
  %v76 = vld [vmem:[%s0 + $0xf8] sm:$0xf]
  %v77 = vld [vmem:[%s0 + $0xfc] sm:$0xf]
  %v78 = vld [vmem:[%s1] sm:$0xf]
  %v79 = vld [vmem:[%s1 + $0x4] sm:$0xf]
  %v80 = vld [vmem:[%s1 + $0x8] sm:$0xf]
  %v81 = vld [vmem:[%s1 + $0xc] sm:$0xf]
  %v82 = vld [vmem:[%s1 + $0x10] sm:$0xf]
  %v83 = vld [vmem:[%s1 + $0x14] sm:$0xf]
  %v84 = vld [vmem:[%s1 + $0x18] sm:$0xf]
  %v85 = vld [vmem:[%s1 + $0x1c] sm:$0xf]
  %v86 = vld [vmem:[%s1 + $0x20] sm:$0xf]
  %v87 = vld [vmem:[%s1 + $0x24] sm:$0xf]
  %v88 = vld [vmem:[%s1 + $0x28] sm:$0xf]
  %v89 = vld [vmem:[%s1 + $0x2c] sm:$0xf]
  %v90 = vld [vmem:[%s1 + $0x30] sm:$0xf]
  %v91 = vld [vmem:[%s1 + $0x34] sm:$0xf]
  %v92 = vld [vmem:[%s1 + $0x38] sm:$0xf]
  %v93 = vld [vmem:[%s1 + $0x3c] sm:$0xf]
  %v158 = vunpack.c.l.b16 %v14
  %v159 = vunpack.c.l.b16 %v15
  %v160 = vunpack.c.l.b16 %v16
  %v161 = vunpack.c.l.b16 %v17
  %v162 = vunpack.c.l.b16 %v18
  %v163 = vunpack.c.l.b16 %v19
  %v164 = vunpack.c.l.b16 %v20
  %v165 = vunpack.c.l.b16 %v21
  %v166 = vunpack.c.l.b16 %v22
  %v167 = vunpack.c.l.b16 %v23
  %v168 = vunpack.c.l.b16 %v24
  %v169 = vunpack.c.l.b16 %v25
  %v170 = vunpack.c.l.b16 %v26
  %v171 = vunpack.c.l.b16 %v27
  %v172 = vunpack.c.l.b16 %v28
  %v173 = vunpack.c.l.b16 %v29
  %v174 = vunpack.c.l.b16 %v30
  %v175 = vunpack.c.l.b16 %v31
  %v176 = vunpack.c.l.b16 %v32
  %v177 = vunpack.c.l.b16 %v33
  %v178 = vunpack.c.l.b16 %v34
  %v179 = vunpack.c.l.b16 %v35
  %v180 = vunpack.c.l.b16 %v36
  %v181 = vunpack.c.l.b16 %v37
  %v182 = vunpack.c.l.b16 %v38
  %v183 = vunpack.c.l.b16 %v39
  %v184 = vunpack.c.l.b16 %v40
  %v185 = vunpack.c.l.b16 %v41
  %v186 = vunpack.c.l.b16 %v42
  %v187 = vunpack.c.l.b16 %v43
  %v188 = vunpack.c.l.b16 %v44
  %v189 = vunpack.c.l.b16 %v45
  %v190 = vunpack.c.l.b16 %v46
  %v191 = vunpack.c.l.b16 %v47
  %v192 = vunpack.c.l.b16 %v48
  %v193 = vunpack.c.l.b16 %v49
  %v194 = vunpack.c.l.b16 %v50
  %v195 = vunpack.c.l.b16 %v51
  %v196 = vunpack.c.l.b16 %v52
  %v197 = vunpack.c.l.b16 %v53
  %v198 = vunpack.c.l.b16 %v54
  %v199 = vunpack.c.l.b16 %v55
  %v200 = vunpack.c.l.b16 %v56
  %v201 = vunpack.c.l.b16 %v57
  %v202 = vunpack.c.l.b16 %v58
  %v203 = vunpack.c.l.b16 %v59
  %v204 = vunpack.c.l.b16 %v60
  %v205 = vunpack.c.l.b16 %v61
  %v206 = vunpack.c.l.b16 %v62
  %v207 = vunpack.c.l.b16 %v63
  %v208 = vunpack.c.l.b16 %v64
  %v209 = vunpack.c.l.b16 %v65
  %v210 = vunpack.c.l.b16 %v66
  %v211 = vunpack.c.l.b16 %v67
  %v212 = vunpack.c.l.b16 %v68
  %v213 = vunpack.c.l.b16 %v69
  %v214 = vunpack.c.l.b16 %v70
  %v215 = vunpack.c.l.b16 %v71
  %v216 = vunpack.c.l.b16 %v72
  %v217 = vunpack.c.l.b16 %v73
  %v218 = vunpack.c.l.b16 %v74
  %v219 = vunpack.c.l.b16 %v75
  %v220 = vunpack.c.l.b16 %v76
  %v221 = vunpack.c.l.b16 %v77
  %v222 = vpack.c.b16 %v159, %v158
  %v223 = vpack.c.b16 %v161, %v160
  %v224 = vpack.c.b16 %v163, %v162
  %v225 = vpack.c.b16 %v165, %v164
  %v226 = vpack.c.b16 %v167, %v166
  %v227 = vpack.c.b16 %v169, %v168
  %v228 = vpack.c.b16 %v171, %v170
  %v229 = vpack.c.b16 %v173, %v172
  %v230 = vpack.c.b16 %v175, %v174
  %v231 = vpack.c.b16 %v177, %v176
  %v232 = vpack.c.b16 %v179, %v178
  %v233 = vpack.c.b16 %v181, %v180
  %v234 = vpack.c.b16 %v183, %v182
  %v235 = vpack.c.b16 %v185, %v184
  %v236 = vpack.c.b16 %v187, %v186
  %v237 = vpack.c.b16 %v189, %v188
  %v238 = vpack.c.b16 %v191, %v190
  %v239 = vpack.c.b16 %v193, %v192
  %v240 = vpack.c.b16 %v195, %v194
  %v241 = vpack.c.b16 %v197, %v196
  %v242 = vpack.c.b16 %v199, %v198
  %v243 = vpack.c.b16 %v201, %v200
  %v244 = vpack.c.b16 %v203, %v202
  %v245 = vpack.c.b16 %v205, %v204
  %v246 = vpack.c.b16 %v207, %v206
  %v247 = vpack.c.b16 %v209, %v208
  %v248 = vpack.c.b16 %v211, %v210
  %v249 = vpack.c.b16 %v213, %v212
  %v250 = vpack.c.b16 %v215, %v214
  %v251 = vpack.c.b16 %v217, %v216
  %v252 = vpack.c.b16 %v219, %v218
  %v253 = vpack.c.b16 %v221, %v220
  %v302 = vunpack.c.l.b16 %v78
  %v303 = vunpack.c.l.b16 %v79
  %v304 = vunpack.c.l.b16 %v80
  %v305 = vunpack.c.l.b16 %v81
  %v306 = vunpack.c.l.b16 %v82
  %v307 = vunpack.c.l.b16 %v83
  %v308 = vunpack.c.l.b16 %v84
  %v309 = vunpack.c.l.b16 %v85
  %v310 = vunpack.c.l.b16 %v86
  %v311 = vunpack.c.l.b16 %v87
  %v312 = vunpack.c.l.b16 %v88
  %v313 = vunpack.c.l.b16 %v89
  %v314 = vunpack.c.l.b16 %v90
  %v315 = vunpack.c.l.b16 %v91
  %v316 = vunpack.c.l.b16 %v92
  %v317 = vunpack.c.l.b16 %v93
  %v318 = vpack.c.b16 %v303, %v302
  %v319 = vpack.c.b16 %v305, %v304
  %v320 = vpack.c.b16 %v307, %v306
  %v321 = vpack.c.b16 %v309, %v308
  %v322 = vpack.c.b16 %v311, %v310
  %v323 = vpack.c.b16 %v313, %v312
  %v324 = vpack.c.b16 %v315, %v314
  %v325 = vpack.c.b16 %v317, %v316
  %334 = vmatprep.subr.bf16.mxu0 0
  %335 = vmatpush1.bf16.msra.mxu0 %v325
  %336 = vmatprep.subr.bf16.mxu0 0
  %337 = vmatpush1.bf16.msra.mxu0 %v324
  %338 = vmatprep.subr.bf16.mxu0 0
  %339 = vmatpush1.bf16.msra.mxu0 %v323
  %340 = vmatprep.subr.bf16.mxu0 0
  %341 = vmatpush1.bf16.msra.mxu0 %v322
  %342 = vmatprep.subr.bf16.mxu0 0
  %343 = vmatpush1.bf16.msra.mxu0 %v321
  %344 = vmatprep.subr.bf16.mxu0 0
  %345 = vmatpush1.bf16.msra.mxu0 %v320
  %346 = vmatprep.subr.bf16.mxu0 0
  %347 = vmatpush1.bf16.msra.mxu0 %v319
  %348 = vmatprep.subr.bf16.mxu0 0
  %349 = vmatpush1.bf16.msra.mxu0 %v318
  %350 = vmatprep.subr.bf16.mxu0 0
  %351 = vmatpush2.bf16.msra.mxu0 0
  %352 = vmatprep.subr.bf16.mxu0 0
  %353 = vmatpush2.bf16.msra.mxu0 0
  %354 = vmatprep.subr.bf16.mxu0 0
  %355 = vmatpush2.bf16.msra.mxu0 0
  %356 = vmatprep.subr.bf16.mxu0 0
  %357 = vmatpush2.bf16.msra.mxu0 0
  %358 = vmatprep.subr.bf16.mxu0 0
  %359 = vmatpush2.bf16.msra.mxu0 0
  %360 = vmatprep.subr.bf16.mxu0 0
  %361 = vmatpush2.bf16.msra.mxu0 0
  %362 = vmatprep.subr.bf16.mxu0 0
  %363 = vmatpush2.bf16.msra.mxu0 0
  %364 = vmatprep.subr.bf16.mxu0 0
  %365 = vmatpush2.bf16.msra.mxu0 0
  %366 = vmatprep.mubr.bf16.mxu0 0
  %367 = vmatmul.mubr.bf16.gmra.mxu0 %v222
  %v368 = vpop.f32.mrf.mxu0
  %v369 = vadd.f32 0.0, %v368
  %v370 = vpop.f32.mrf.mxu0
  %v371 = vpop.f32.mrf.mxu0
  %v372 = vadd.f32 0.0, %v371
  %v373 = vpop.f32.mrf.mxu0
  %374 = vmatprep.mubr.bf16.mxu0 0
  %375 = vmatmul.mubr.bf16.gmra.mxu0 %v223
  %v376 = vpop.f32.mrf.mxu0
  %v377 = vadd.f32 0.0, %v376
  %v378 = vpop.f32.mrf.mxu0
  %v379 = vpop.f32.mrf.mxu0
  %v380 = vadd.f32 0.0, %v379
  %v381 = vpop.f32.mrf.mxu0
  %382 = vmatprep.mubr.bf16.mxu0 0
  %383 = vmatmul.mubr.bf16.gmra.mxu0 %v224
  %v384 = vpop.f32.mrf.mxu0
  %v385 = vadd.f32 0.0, %v384
  %v386 = vpop.f32.mrf.mxu0
  %v387 = vpop.f32.mrf.mxu0
  %v388 = vadd.f32 0.0, %v387
  %v389 = vpop.f32.mrf.mxu0
  %390 = vmatprep.mubr.bf16.mxu0 0
  %391 = vmatmul.mubr.bf16.gmra.mxu0 %v225
  %v392 = vpop.f32.mrf.mxu0
  %v393 = vadd.f32 0.0, %v392
  %v394 = vpop.f32.mrf.mxu0
  %v395 = vpop.f32.mrf.mxu0
  %v396 = vadd.f32 0.0, %v395
  %v397 = vpop.f32.mrf.mxu0
  %398 = vmatprep.mubr.bf16.mxu0 0
  %399 = vmatmul.mubr.bf16.gmra.mxu0 %v226
  %v400 = vpop.f32.mrf.mxu0
  %v401 = vadd.f32 0.0, %v400
  %v402 = vpop.f32.mrf.mxu0
  %v403 = vpop.f32.mrf.mxu0
  %v404 = vadd.f32 0.0, %v403
  %v405 = vpop.f32.mrf.mxu0
  %406 = vmatprep.mubr.bf16.mxu0 0
  %407 = vmatmul.mubr.bf16.gmra.mxu0 %v227
  %v408 = vpop.f32.mrf.mxu0
  %v409 = vadd.f32 0.0, %v408
  %v410 = vpop.f32.mrf.mxu0
  %v411 = vpop.f32.mrf.mxu0
  %v412 = vadd.f32 0.0, %v411
  %v413 = vpop.f32.mrf.mxu0
  %414 = vmatprep.mubr.bf16.mxu0 0
  %415 = vmatmul.mubr.bf16.gmra.mxu0 %v228
  %v416 = vpop.f32.mrf.mxu0
  %v417 = vadd.f32 0.0, %v416
  %v418 = vpop.f32.mrf.mxu0
  %v419 = vpop.f32.mrf.mxu0
  %v420 = vadd.f32 0.0, %v419
  %v421 = vpop.f32.mrf.mxu0
  %422 = vmatprep.mubr.bf16.mxu0 0
  %423 = vmatmul.mubr.bf16.gmra.mxu0 %v229
  %v424 = vpop.f32.mrf.mxu0
  %v425 = vadd.f32 0.0, %v424
  %v426 = vpop.f32.mrf.mxu0
  %v427 = vpop.f32.mrf.mxu0
  %v428 = vadd.f32 0.0, %v427
  %v429 = vpop.f32.mrf.mxu0
  %430 = vmatprep.mubr.bf16.mxu0 0
  %431 = vmatmul.mubr.bf16.gmra.mxu0 %v230
  %v432 = vpop.f32.mrf.mxu0
  %v433 = vadd.f32 0.0, %v432
  %v434 = vpop.f32.mrf.mxu0
  %v435 = vpop.f32.mrf.mxu0
  %v436 = vadd.f32 0.0, %v435
  %v437 = vpop.f32.mrf.mxu0
  %438 = vmatprep.mubr.bf16.mxu0 0
  %439 = vmatmul.mubr.bf16.gmra.mxu0 %v231
  %v440 = vpop.f32.mrf.mxu0
  %v441 = vadd.f32 0.0, %v440
  %v442 = vpop.f32.mrf.mxu0
  %v443 = vpop.f32.mrf.mxu0
  %v444 = vadd.f32 0.0, %v443
  %v445 = vpop.f32.mrf.mxu0
  %446 = vmatprep.mubr.bf16.mxu0 0
  %447 = vmatmul.mubr.bf16.gmra.mxu0 %v232
  %v448 = vpop.f32.mrf.mxu0
  %v449 = vadd.f32 0.0, %v448
  %v450 = vpop.f32.mrf.mxu0
  %v451 = vpop.f32.mrf.mxu0
  %v452 = vadd.f32 0.0, %v451
  %v453 = vpop.f32.mrf.mxu0
  %454 = vmatprep.mubr.bf16.mxu0 0
  %455 = vmatmul.mubr.bf16.gmra.mxu0 %v233
  %v456 = vpop.f32.mrf.mxu0
  %v457 = vadd.f32 0.0, %v456
  %v458 = vpop.f32.mrf.mxu0
  %v459 = vpop.f32.mrf.mxu0
  %v460 = vadd.f32 0.0, %v459
  %v461 = vpop.f32.mrf.mxu0
  %462 = vmatprep.mubr.bf16.mxu0 0
  %463 = vmatmul.mubr.bf16.gmra.mxu0 %v234
  %v464 = vpop.f32.mrf.mxu0
  %v465 = vadd.f32 0.0, %v464
  %v466 = vpop.f32.mrf.mxu0
  %v467 = vpop.f32.mrf.mxu0
  %v468 = vadd.f32 0.0, %v467
  %v469 = vpop.f32.mrf.mxu0
  %470 = vmatprep.mubr.bf16.mxu0 0
  %471 = vmatmul.mubr.bf16.gmra.mxu0 %v235
  %v472 = vpop.f32.mrf.mxu0
  %v473 = vadd.f32 0.0, %v472
  %v474 = vpop.f32.mrf.mxu0
  %v475 = vpop.f32.mrf.mxu0
  %v476 = vadd.f32 0.0, %v475
  %v477 = vpop.f32.mrf.mxu0
  %478 = vmatprep.mubr.bf16.mxu0 0
  %479 = vmatmul.mubr.bf16.gmra.mxu0 %v236
  %v480 = vpop.f32.mrf.mxu0
  %v481 = vadd.f32 0.0, %v480
  %v482 = vpop.f32.mrf.mxu0
  %v483 = vpop.f32.mrf.mxu0
  %v484 = vadd.f32 0.0, %v483
  %v485 = vpop.f32.mrf.mxu0
  %486 = vmatprep.mubr.bf16.mxu0 0
  %487 = vmatmul.mubr.bf16.gmra.mxu0 %v237
  %v488 = vpop.f32.mrf.mxu0
  %v489 = vadd.f32 0.0, %v488
  %v490 = vpop.f32.mrf.mxu0
  %v491 = vpop.f32.mrf.mxu0
  %v492 = vadd.f32 0.0, %v491
  %v493 = vpop.f32.mrf.mxu0
  %494 = vmatprep.mubr.bf16.mxu0 0
  %495 = vmatmul.mubr.bf16.gmra.mxu0 %v238
  %v496 = vpop.f32.mrf.mxu0
  %v497 = vadd.f32 0.0, %v496
  %v498 = vpop.f32.mrf.mxu0
  %v499 = vpop.f32.mrf.mxu0
  %v500 = vadd.f32 0.0, %v499
  %v501 = vpop.f32.mrf.mxu0
  %502 = vmatprep.mubr.bf16.mxu0 0
  %503 = vmatmul.mubr.bf16.gmra.mxu0 %v239
  %v504 = vpop.f32.mrf.mxu0
  %v505 = vadd.f32 0.0, %v504
  %v506 = vpop.f32.mrf.mxu0
  %v507 = vpop.f32.mrf.mxu0
  %v508 = vadd.f32 0.0, %v507
  %v509 = vpop.f32.mrf.mxu0
  %510 = vmatprep.mubr.bf16.mxu0 0
  %511 = vmatmul.mubr.bf16.gmra.mxu0 %v240
  %v512 = vpop.f32.mrf.mxu0
  %v513 = vadd.f32 0.0, %v512
  %v514 = vpop.f32.mrf.mxu0
  %v515 = vpop.f32.mrf.mxu0
  %v516 = vadd.f32 0.0, %v515
  %v517 = vpop.f32.mrf.mxu0
  %518 = vmatprep.mubr.bf16.mxu0 0
  %519 = vmatmul.mubr.bf16.gmra.mxu0 %v241
  %v520 = vpop.f32.mrf.mxu0
  %v521 = vadd.f32 0.0, %v520
  %v522 = vpop.f32.mrf.mxu0
  %v523 = vpop.f32.mrf.mxu0
  %v524 = vadd.f32 0.0, %v523
  %v525 = vpop.f32.mrf.mxu0
  %526 = vmatprep.mubr.bf16.mxu0 0
  %527 = vmatmul.mubr.bf16.gmra.mxu0 %v242
  %v528 = vpop.f32.mrf.mxu0
  %v529 = vadd.f32 0.0, %v528
  %v530 = vpop.f32.mrf.mxu0
  %v531 = vpop.f32.mrf.mxu0
  %v532 = vadd.f32 0.0, %v531
  %v533 = vpop.f32.mrf.mxu0
  %534 = vmatprep.mubr.bf16.mxu0 0
  %535 = vmatmul.mubr.bf16.gmra.mxu0 %v243
  %v536 = vpop.f32.mrf.mxu0
  %v537 = vadd.f32 0.0, %v536
  %v538 = vpop.f32.mrf.mxu0
  %v539 = vpop.f32.mrf.mxu0
  %v540 = vadd.f32 0.0, %v539
  %v541 = vpop.f32.mrf.mxu0
  %542 = vmatprep.mubr.bf16.mxu0 0
  %543 = vmatmul.mubr.bf16.gmra.mxu0 %v244
  %v544 = vpop.f32.mrf.mxu0
  %v545 = vadd.f32 0.0, %v544
  %v546 = vpop.f32.mrf.mxu0
  %v547 = vpop.f32.mrf.mxu0
  %v548 = vadd.f32 0.0, %v547
  %v549 = vpop.f32.mrf.mxu0
  %550 = vmatprep.mubr.bf16.mxu0 0
  %551 = vmatmul.mubr.bf16.gmra.mxu0 %v245
  %v552 = vpop.f32.mrf.mxu0
  %v553 = vadd.f32 0.0, %v552
  %v554 = vpop.f32.mrf.mxu0
  %v555 = vpop.f32.mrf.mxu0
  %v556 = vadd.f32 0.0, %v555
  %v557 = vpop.f32.mrf.mxu0
  %558 = vmatprep.mubr.bf16.mxu0 0
  %559 = vmatmul.mubr.bf16.gmra.mxu0 %v246
  %v560 = vpop.f32.mrf.mxu0
  %v561 = vadd.f32 0.0, %v560
  %v562 = vpop.f32.mrf.mxu0
  %v563 = vpop.f32.mrf.mxu0
  %v564 = vadd.f32 0.0, %v563
  %v565 = vpop.f32.mrf.mxu0
  %566 = vmatprep.mubr.bf16.mxu0 0
  %567 = vmatmul.mubr.bf16.gmra.mxu0 %v247
  %v568 = vpop.f32.mrf.mxu0
  %v569 = vadd.f32 0.0, %v568
  %v570 = vpop.f32.mrf.mxu0
  %v571 = vpop.f32.mrf.mxu0
  %v572 = vadd.f32 0.0, %v571
  %v573 = vpop.f32.mrf.mxu0
  %574 = vmatprep.mubr.bf16.mxu0 0
  %575 = vmatmul.mubr.bf16.gmra.mxu0 %v248
  %v576 = vpop.f32.mrf.mxu0
  %v577 = vadd.f32 0.0, %v576
  %v578 = vpop.f32.mrf.mxu0
  %v579 = vpop.f32.mrf.mxu0
  %v580 = vadd.f32 0.0, %v579
  %v581 = vpop.f32.mrf.mxu0
  %582 = vmatprep.mubr.bf16.mxu0 0
  %583 = vmatmul.mubr.bf16.gmra.mxu0 %v249
  %v584 = vpop.f32.mrf.mxu0
  %v585 = vadd.f32 0.0, %v584
  %v586 = vpop.f32.mrf.mxu0
  %v587 = vpop.f32.mrf.mxu0
  %v588 = vadd.f32 0.0, %v587
  %v589 = vpop.f32.mrf.mxu0
  %590 = vmatprep.mubr.bf16.mxu0 0
  %591 = vmatmul.mubr.bf16.gmra.mxu0 %v250
  %v592 = vpop.f32.mrf.mxu0
  %v593 = vadd.f32 0.0, %v592
  %v594 = vpop.f32.mrf.mxu0
  %v595 = vpop.f32.mrf.mxu0
  %v596 = vadd.f32 0.0, %v595
  %v597 = vpop.f32.mrf.mxu0
  %598 = vmatprep.mubr.bf16.mxu0 0
  %599 = vmatmul.mubr.bf16.gmra.mxu0 %v251
  %v600 = vpop.f32.mrf.mxu0
  %v601 = vadd.f32 0.0, %v600
  %v602 = vpop.f32.mrf.mxu0
  %v603 = vpop.f32.mrf.mxu0
  %v604 = vadd.f32 0.0, %v603
  %v605 = vpop.f32.mrf.mxu0
  %606 = vmatprep.mubr.bf16.mxu0 0
  %607 = vmatmul.mubr.bf16.gmra.mxu0 %v252
  %v608 = vpop.f32.mrf.mxu0
  %v609 = vadd.f32 0.0, %v608
  %v610 = vpop.f32.mrf.mxu0
  %v611 = vpop.f32.mrf.mxu0
  %v612 = vadd.f32 0.0, %v611
  %v613 = vpop.f32.mrf.mxu0
  %614 = vmatprep.mubr.bf16.mxu0 0
  %615 = vmatmul.mubr.bf16.gmra.mxu0 %v253
  %v616 = vpop.f32.mrf.mxu0
  %v617 = vadd.f32 0.0, %v616
  %v618 = vpop.f32.mrf.mxu0
  %v619 = vpop.f32.mrf.mxu0
  %v620 = vadd.f32 0.0, %v619
  %v621 = vpop.f32.mrf.mxu0
  %622 = vdwg.mxu0
  %v623 = vpack.c.bf16 %v372, %v369
  %v624 = vpack.c.bf16 %v380, %v377
  %v625 = vpack.c.bf16 %v388, %v385
  %v626 = vpack.c.bf16 %v396, %v393
  %v627 = vpack.c.bf16 %v404, %v401
  %v628 = vpack.c.bf16 %v412, %v409
  %v629 = vpack.c.bf16 %v420, %v417
  %v630 = vpack.c.bf16 %v428, %v425
  %v631 = vpack.c.bf16 %v436, %v433
  %v632 = vpack.c.bf16 %v444, %v441
  %v633 = vpack.c.bf16 %v452, %v449
  %v634 = vpack.c.bf16 %v460, %v457
  %v635 = vpack.c.bf16 %v468, %v465
  %v636 = vpack.c.bf16 %v476, %v473
  %v637 = vpack.c.bf16 %v484, %v481
  %v638 = vpack.c.bf16 %v492, %v489
  %v639 = vpack.c.bf16 %v500, %v497
  %v640 = vpack.c.bf16 %v508, %v505
  %v641 = vpack.c.bf16 %v516, %v513
  %v642 = vpack.c.bf16 %v524, %v521
  %v643 = vpack.c.bf16 %v532, %v529
  %v644 = vpack.c.bf16 %v540, %v537
  %v645 = vpack.c.bf16 %v548, %v545
  %v646 = vpack.c.bf16 %v556, %v553
  %v647 = vpack.c.bf16 %v564, %v561
  %v648 = vpack.c.bf16 %v572, %v569
  %v649 = vpack.c.bf16 %v580, %v577
  %v650 = vpack.c.bf16 %v588, %v585
  %v651 = vpack.c.bf16 %v596, %v593
  %v652 = vpack.c.bf16 %v604, %v601
  %v653 = vpack.c.bf16 %v612, %v609
  %v654 = vpack.c.bf16 %v620, %v617
  %v687 = vunpack.c.l.b16 %v623
  %v688 = vunpack.c.h.b16 %v623
  %v689 = vunpack.c.l.b16 %v624
  %v690 = vunpack.c.h.b16 %v624
  %v691 = vunpack.c.l.b16 %v625
  %v692 = vunpack.c.h.b16 %v625
  %v693 = vunpack.c.l.b16 %v626
  %v694 = vunpack.c.h.b16 %v626
  %v695 = vunpack.c.l.b16 %v627
  %v696 = vunpack.c.h.b16 %v627
  %v697 = vunpack.c.l.b16 %v628
  %v698 = vunpack.c.h.b16 %v628
  %v699 = vunpack.c.l.b16 %v629
  %v700 = vunpack.c.h.b16 %v629
  %v701 = vunpack.c.l.b16 %v630
  %v702 = vunpack.c.h.b16 %v630
  %v703 = vunpack.c.l.b16 %v631
  %v704 = vunpack.c.h.b16 %v631
  %v705 = vunpack.c.l.b16 %v632
  %v706 = vunpack.c.h.b16 %v632
  %v707 = vunpack.c.l.b16 %v633
  %v708 = vunpack.c.h.b16 %v633
  %v709 = vunpack.c.l.b16 %v634
  %v710 = vunpack.c.h.b16 %v634
  %v711 = vunpack.c.l.b16 %v635
  %v712 = vunpack.c.h.b16 %v635
  %v713 = vunpack.c.l.b16 %v636
  %v714 = vunpack.c.h.b16 %v636
  %v715 = vunpack.c.l.b16 %v637
  %v716 = vunpack.c.h.b16 %v637
  %v717 = vunpack.c.l.b16 %v638
  %v718 = vunpack.c.h.b16 %v638
  %v719 = vunpack.c.l.b16 %v639
  %v720 = vunpack.c.h.b16 %v639
  %v721 = vunpack.c.l.b16 %v640
  %v722 = vunpack.c.h.b16 %v640
  %v723 = vunpack.c.l.b16 %v641
  %v724 = vunpack.c.h.b16 %v641
  %v725 = vunpack.c.l.b16 %v642
  %v726 = vunpack.c.h.b16 %v642
  %v727 = vunpack.c.l.b16 %v643
  %v728 = vunpack.c.h.b16 %v643
  %v729 = vunpack.c.l.b16 %v644
  %v730 = vunpack.c.h.b16 %v644
  %v731 = vunpack.c.l.b16 %v645
  %v732 = vunpack.c.h.b16 %v645
  %v733 = vunpack.c.l.b16 %v646
  %v734 = vunpack.c.h.b16 %v646
  %v735 = vunpack.c.l.b16 %v647
  %v736 = vunpack.c.h.b16 %v647
  %v737 = vunpack.c.l.b16 %v648
  %v738 = vunpack.c.h.b16 %v648
  %v739 = vunpack.c.l.b16 %v649
  %v740 = vunpack.c.h.b16 %v649
  %v741 = vunpack.c.l.b16 %v650
  %v742 = vunpack.c.h.b16 %v650
  %v743 = vunpack.c.l.b16 %v651
  %v744 = vunpack.c.h.b16 %v651
  %v745 = vunpack.c.l.b16 %v652
  %v746 = vunpack.c.h.b16 %v652
  %v747 = vunpack.c.l.b16 %v653
  %v748 = vunpack.c.h.b16 %v653
  %v749 = vunpack.c.l.b16 %v654
  %v750 = vunpack.c.h.b16 %v654
  %v751 = vpack.c.b16 %v687, %v687
  %v752 = vpack.c.b16 %v688, %v688
  %v753 = vpack.c.b16 %v689, %v689
  %v754 = vpack.c.b16 %v690, %v690
  %v755 = vpack.c.b16 %v691, %v691
  %v756 = vpack.c.b16 %v692, %v692
  %v757 = vpack.c.b16 %v693, %v693
  %v758 = vpack.c.b16 %v694, %v694
  %v759 = vpack.c.b16 %v695, %v695
  %v760 = vpack.c.b16 %v696, %v696
  %v761 = vpack.c.b16 %v697, %v697
  %v762 = vpack.c.b16 %v698, %v698
  %v763 = vpack.c.b16 %v699, %v699
  %v764 = vpack.c.b16 %v700, %v700
  %v765 = vpack.c.b16 %v701, %v701
  %v766 = vpack.c.b16 %v702, %v702
  %v767 = vpack.c.b16 %v703, %v703
  %v768 = vpack.c.b16 %v704, %v704
  %v769 = vpack.c.b16 %v705, %v705
  %v770 = vpack.c.b16 %v706, %v706
  %v771 = vpack.c.b16 %v707, %v707
  %v772 = vpack.c.b16 %v708, %v708
  %v773 = vpack.c.b16 %v709, %v709
  %v774 = vpack.c.b16 %v710, %v710
  %v775 = vpack.c.b16 %v711, %v711
  %v776 = vpack.c.b16 %v712, %v712
  %v777 = vpack.c.b16 %v713, %v713
  %v778 = vpack.c.b16 %v714, %v714
  %v779 = vpack.c.b16 %v715, %v715
  %v780 = vpack.c.b16 %v716, %v716
  %v781 = vpack.c.b16 %v717, %v717
  %v782 = vpack.c.b16 %v718, %v718
  %v783 = vpack.c.b16 %v719, %v719
  %v784 = vpack.c.b16 %v720, %v720
  %v785 = vpack.c.b16 %v721, %v721
  %v786 = vpack.c.b16 %v722, %v722
  %v787 = vpack.c.b16 %v723, %v723
  %v788 = vpack.c.b16 %v724, %v724
  %v789 = vpack.c.b16 %v725, %v725
  %v790 = vpack.c.b16 %v726, %v726
  %v791 = vpack.c.b16 %v727, %v727
  %v792 = vpack.c.b16 %v728, %v728
  %v793 = vpack.c.b16 %v729, %v729
  %v794 = vpack.c.b16 %v730, %v730
  %v795 = vpack.c.b16 %v731, %v731
  %v796 = vpack.c.b16 %v732, %v732
  %v797 = vpack.c.b16 %v733, %v733
  %v798 = vpack.c.b16 %v734, %v734
  %v799 = vpack.c.b16 %v735, %v735
  %v800 = vpack.c.b16 %v736, %v736
  %v801 = vpack.c.b16 %v737, %v737
  %v802 = vpack.c.b16 %v738, %v738
  %v803 = vpack.c.b16 %v739, %v739
  %v804 = vpack.c.b16 %v740, %v740
  %v805 = vpack.c.b16 %v741, %v741
  %v806 = vpack.c.b16 %v742, %v742
  %v807 = vpack.c.b16 %v743, %v743
  %v808 = vpack.c.b16 %v744, %v744
  %v809 = vpack.c.b16 %v745, %v745
  %v810 = vpack.c.b16 %v746, %v746
  %v811 = vpack.c.b16 %v747, %v747
  %v812 = vpack.c.b16 %v748, %v748
  %v813 = vpack.c.b16 %v749, %v749
  %v814 = vpack.c.b16 %v750, %v750
  %879 = vst [vmem:[%s2] sm:$0xf] %v751
  %880 = vst [vmem:[%s2 + $0x4] sm:$0xf] %v752
  %881 = vst [vmem:[%s2 + $0x8] sm:$0xf] %v753
  %882 = vst [vmem:[%s2 + $0xc] sm:$0xf] %v754
  %883 = vst [vmem:[%s2 + $0x10] sm:$0xf] %v755
  %884 = vst [vmem:[%s2 + $0x14] sm:$0xf] %v756
  %885 = vst [vmem:[%s2 + $0x18] sm:$0xf] %v757
  %886 = vst [vmem:[%s2 + $0x1c] sm:$0xf] %v758
  %887 = vst [vmem:[%s2 + $0x20] sm:$0xf] %v759
  %888 = vst [vmem:[%s2 + $0x24] sm:$0xf] %v760
  %889 = vst [vmem:[%s2 + $0x28] sm:$0xf] %v761
  %890 = vst [vmem:[%s2 + $0x2c] sm:$0xf] %v762
  %891 = vst [vmem:[%s2 + $0x30] sm:$0xf] %v763
  %892 = vst [vmem:[%s2 + $0x34] sm:$0xf] %v764
  %893 = vst [vmem:[%s2 + $0x38] sm:$0xf] %v765
  %894 = vst [vmem:[%s2 + $0x3c] sm:$0xf] %v766
  %895 = vst [vmem:[%s2 + $0x40] sm:$0xf] %v767
  %896 = vst [vmem:[%s2 + $0x44] sm:$0xf] %v768
  %897 = vst [vmem:[%s2 + $0x48] sm:$0xf] %v769
  %898 = vst [vmem:[%s2 + $0x4c] sm:$0xf] %v770
  %899 = vst [vmem:[%s2 + $0x50] sm:$0xf] %v771
  %900 = vst [vmem:[%s2 + $0x54] sm:$0xf] %v772
  %901 = vst [vmem:[%s2 + $0x58] sm:$0xf] %v773
  %902 = vst [vmem:[%s2 + $0x5c] sm:$0xf] %v774
  %903 = vst [vmem:[%s2 + $0x60] sm:$0xf] %v775
  %904 = vst [vmem:[%s2 + $0x64] sm:$0xf] %v776
  %905 = vst [vmem:[%s2 + $0x68] sm:$0xf] %v777
  %906 = vst [vmem:[%s2 + $0x6c] sm:$0xf] %v778
  %907 = vst [vmem:[%s2 + $0x70] sm:$0xf] %v779
  %908 = vst [vmem:[%s2 + $0x74] sm:$0xf] %v780
  %909 = vst [vmem:[%s2 + $0x78] sm:$0xf] %v781
  %910 = vst [vmem:[%s2 + $0x7c] sm:$0xf] %v782
  %911 = vst [vmem:[%s2 + $0x80] sm:$0xf] %v783
  %912 = vst [vmem:[%s2 + $0x84] sm:$0xf] %v784
  %913 = vst [vmem:[%s2 + $0x88] sm:$0xf] %v785
  %914 = vst [vmem:[%s2 + $0x8c] sm:$0xf] %v786
  %915 = vst [vmem:[%s2 + $0x90] sm:$0xf] %v787
  %916 = vst [vmem:[%s2 + $0x94] sm:$0xf] %v788
  %917 = vst [vmem:[%s2 + $0x98] sm:$0xf] %v789
  %918 = vst [vmem:[%s2 + $0x9c] sm:$0xf] %v790
  %919 = vst [vmem:[%s2 + $0xa0] sm:$0xf] %v791
  %920 = vst [vmem:[%s2 + $0xa4] sm:$0xf] %v792
  %921 = vst [vmem:[%s2 + $0xa8] sm:$0xf] %v793
  %922 = vst [vmem:[%s2 + $0xac] sm:$0xf] %v794
  %923 = vst [vmem:[%s2 + $0xb0] sm:$0xf] %v795
  %924 = vst [vmem:[%s2 + $0xb4] sm:$0xf] %v796
  %925 = vst [vmem:[%s2 + $0xb8] sm:$0xf] %v797
  %926 = vst [vmem:[%s2 + $0xbc] sm:$0xf] %v798
  %927 = vst [vmem:[%s2 + $0xc0] sm:$0xf] %v799
  %928 = vst [vmem:[%s2 + $0xc4] sm:$0xf] %v800
  %929 = vst [vmem:[%s2 + $0xc8] sm:$0xf] %v801
  %930 = vst [vmem:[%s2 + $0xcc] sm:$0xf] %v802
  %931 = vst [vmem:[%s2 + $0xd0] sm:$0xf] %v803
  %932 = vst [vmem:[%s2 + $0xd4] sm:$0xf] %v804
  %933 = vst [vmem:[%s2 + $0xd8] sm:$0xf] %v805
  %934 = vst [vmem:[%s2 + $0xdc] sm:$0xf] %v806
  %935 = vst [vmem:[%s2 + $0xe0] sm:$0xf] %v807
  %936 = vst [vmem:[%s2 + $0xe4] sm:$0xf] %v808
  %937 = vst [vmem:[%s2 + $0xe8] sm:$0xf] %v809
  %938 = vst [vmem:[%s2 + $0xec] sm:$0xf] %v810
  %939 = vst [vmem:[%s2 + $0xf0] sm:$0xf] %v811
  %940 = vst [vmem:[%s2 + $0xf4] sm:$0xf] %v812
  %941 = vst [vmem:[%s2 + $0xf8] sm:$0xf] %v813
  %942 = vst [vmem:[%s2 + $0xfc] sm:$0xf] %v814
  %943 = vst [vmem:[%s3] sm:$0xff] 0.0
  %v944 = vadd.f32 %v369, %v372
  %v945 = vadd.f32 %v944, %v377
  %v946 = vadd.f32 %v945, %v380
  %v947 = vadd.f32 %v946, %v385
  %v948 = vadd.f32 %v947, %v388
  %v949 = vadd.f32 %v948, %v393
  %v950 = vadd.f32 %v949, %v396
  %v951 = vadd.f32 %v950, %v401
  %v952 = vadd.f32 %v951, %v404
  %v953 = vadd.f32 %v952, %v409
  %v954 = vadd.f32 %v953, %v412
  %v955 = vadd.f32 %v954, %v417
  %v956 = vadd.f32 %v955, %v420
  %v957 = vadd.f32 %v956, %v425
  %v958 = vadd.f32 %v957, %v428
  %v959 = vadd.f32 %v958, %v433
  %v960 = vadd.f32 %v959, %v436
  %v961 = vadd.f32 %v960, %v441
  %v962 = vadd.f32 %v961, %v444
  %v963 = vadd.f32 %v962, %v449
  %v964 = vadd.f32 %v963, %v452
  %v965 = vadd.f32 %v964, %v457
  %v966 = vadd.f32 %v965, %v460
  %v967 = vadd.f32 %v966, %v465
  %v968 = vadd.f32 %v967, %v468
  %v969 = vadd.f32 %v968, %v473
  %v970 = vadd.f32 %v969, %v476
  %v971 = vadd.f32 %v970, %v481
  %v972 = vadd.f32 %v971, %v484
  %v973 = vadd.f32 %v972, %v489
  %v974 = vadd.f32 %v973, %v492
  %v975 = vadd.f32 %v974, %v497
  %v976 = vadd.f32 %v975, %v500
  %v977 = vadd.f32 %v976, %v505
  %v978 = vadd.f32 %v977, %v508
  %v979 = vadd.f32 %v978, %v513
  %v980 = vadd.f32 %v979, %v516
  %v981 = vadd.f32 %v980, %v521
  %v982 = vadd.f32 %v981, %v524
  %v983 = vadd.f32 %v982, %v529
  %v984 = vadd.f32 %v983, %v532
  %v985 = vadd.f32 %v984, %v537
  %v986 = vadd.f32 %v985, %v540
  %v987 = vadd.f32 %v986, %v545
  %v988 = vadd.f32 %v987, %v548
  %v989 = vadd.f32 %v988, %v553
  %v990 = vadd.f32 %v989, %v556
  %v991 = vadd.f32 %v990, %v561
  %v992 = vadd.f32 %v991, %v564
  %v993 = vadd.f32 %v992, %v569
  %v994 = vadd.f32 %v993, %v572
  %v995 = vadd.f32 %v994, %v577
  %v996 = vadd.f32 %v995, %v580
  %v997 = vadd.f32 %v996, %v585
  %v998 = vadd.f32 %v997, %v588
  %v999 = vadd.f32 %v998, %v593
  %v1000 = vadd.f32 %v999, %v596
  %v1001 = vadd.f32 %v1000, %v601
  %v1002 = vadd.f32 %v1001, %v604
  %v1003 = vadd.f32 %v1002, %v609
  %v1004 = vadd.f32 %v1003, %v612
  %v1005 = vadd.f32 %v1004, %v617
  %v1006 = vadd.f32 %v1005, %v620
  %v1007 = vrot.slane %v1006, 4
  %v1008 = vadd.f32 %v1006, %v1007
  %v1009 = vrot.slane %v1008, 2
  %v1010 = vadd.f32 %v1008, %v1009
  %v1011 = vrot.slane %v1010, 1
  %v1012 = vadd.f32 %v1010, %v1011
  %1013 = vst [vmem:[%s3] sm:$0x1] %v1012
  %v1014 = vmul.f32 %v369, %v369
  %v1015 = vmul.f32 %v372, %v372
  %v1016 = vmul.f32 %v377, %v377
  %v1017 = vmul.f32 %v380, %v380
  %v1018 = vmul.f32 %v385, %v385
  %v1019 = vmul.f32 %v388, %v388
  %v1020 = vmul.f32 %v393, %v393
  %v1021 = vmul.f32 %v396, %v396
  %v1022 = vmul.f32 %v401, %v401
  %v1023 = vmul.f32 %v404, %v404
  %v1024 = vmul.f32 %v409, %v409
  %v1025 = vmul.f32 %v412, %v412
  %v1026 = vmul.f32 %v417, %v417
  %v1027 = vmul.f32 %v420, %v420
  %v1028 = vmul.f32 %v425, %v425
  %v1029 = vmul.f32 %v428, %v428
  %v1030 = vmul.f32 %v433, %v433
  %v1031 = vmul.f32 %v436, %v436
  %v1032 = vmul.f32 %v441, %v441
  %v1033 = vmul.f32 %v444, %v444
  %v1034 = vmul.f32 %v449, %v449
  %v1035 = vmul.f32 %v452, %v452
  %v1036 = vmul.f32 %v457, %v457
  %v1037 = vmul.f32 %v460, %v460
  %v1038 = vmul.f32 %v465, %v465
  %v1039 = vmul.f32 %v468, %v468
  %v1040 = vmul.f32 %v473, %v473
  %v1041 = vmul.f32 %v476, %v476
  %v1042 = vmul.f32 %v481, %v481
  %v1043 = vmul.f32 %v484, %v484
  %v1044 = vmul.f32 %v489, %v489
  %v1045 = vmul.f32 %v492, %v492
  %v1046 = vmul.f32 %v497, %v497
  %v1047 = vmul.f32 %v500, %v500
  %v1048 = vmul.f32 %v505, %v505
  %v1049 = vmul.f32 %v508, %v508
  %v1050 = vmul.f32 %v513, %v513
  %v1051 = vmul.f32 %v516, %v516
  %v1052 = vmul.f32 %v521, %v521
  %v1053 = vmul.f32 %v524, %v524
  %v1054 = vmul.f32 %v529, %v529
  %v1055 = vmul.f32 %v532, %v532
  %v1056 = vmul.f32 %v537, %v537
  %v1057 = vmul.f32 %v540, %v540
  %v1058 = vmul.f32 %v545, %v545
  %v1059 = vmul.f32 %v548, %v548
  %v1060 = vmul.f32 %v553, %v553
  %v1061 = vmul.f32 %v556, %v556
  %v1062 = vmul.f32 %v561, %v561
  %v1063 = vmul.f32 %v564, %v564
  %v1064 = vmul.f32 %v569, %v569
  %v1065 = vmul.f32 %v572, %v572
  %v1066 = vmul.f32 %v577, %v577
  %v1067 = vmul.f32 %v580, %v580
  %v1068 = vmul.f32 %v585, %v585
  %v1069 = vmul.f32 %v588, %v588
  %v1070 = vmul.f32 %v593, %v593
  %v1071 = vmul.f32 %v596, %v596
  %v1072 = vmul.f32 %v601, %v601
  %v1073 = vmul.f32 %v604, %v604
  %v1074 = vmul.f32 %v609, %v609
  %v1075 = vmul.f32 %v612, %v612
  %v1076 = vmul.f32 %v617, %v617
  %v1077 = vmul.f32 %v620, %v620
  %v1078 = vadd.f32 %v1014, %v1015
  %v1079 = vadd.f32 %v1078, %v1016
  %v1080 = vadd.f32 %v1079, %v1017
  %v1081 = vadd.f32 %v1080, %v1018
  %v1082 = vadd.f32 %v1081, %v1019
  %v1083 = vadd.f32 %v1082, %v1020
  %v1084 = vadd.f32 %v1083, %v1021
  %v1085 = vadd.f32 %v1084, %v1022
  %v1086 = vadd.f32 %v1085, %v1023
  %v1087 = vadd.f32 %v1086, %v1024
  %v1088 = vadd.f32 %v1087, %v1025
  %v1089 = vadd.f32 %v1088, %v1026
  %v1090 = vadd.f32 %v1089, %v1027
  %v1091 = vadd.f32 %v1090, %v1028
  %v1092 = vadd.f32 %v1091, %v1029
  %v1093 = vadd.f32 %v1092, %v1030
  %v1094 = vadd.f32 %v1093, %v1031
  %v1095 = vadd.f32 %v1094, %v1032
  %v1096 = vadd.f32 %v1095, %v1033
  %v1097 = vadd.f32 %v1096, %v1034
  %v1098 = vadd.f32 %v1097, %v1035
  %v1099 = vadd.f32 %v1098, %v1036
  %v1100 = vadd.f32 %v1099, %v1037
  %v1101 = vadd.f32 %v1100, %v1038
  %v1102 = vadd.f32 %v1101, %v1039
  %v1103 = vadd.f32 %v1102, %v1040
  %v1104 = vadd.f32 %v1103, %v1041
  %v1105 = vadd.f32 %v1104, %v1042
  %v1106 = vadd.f32 %v1105, %v1043
  %v1107 = vadd.f32 %v1106, %v1044
  %v1108 = vadd.f32 %v1107, %v1045
  %v1109 = vadd.f32 %v1108, %v1046
  %v1110 = vadd.f32 %v1109, %v1047
  %v1111 = vadd.f32 %v1110, %v1048
  %v1112 = vadd.f32 %v1111, %v1049
  %v1113 = vadd.f32 %v1112, %v1050
  %v1114 = vadd.f32 %v1113, %v1051
  %v1115 = vadd.f32 %v1114, %v1052
  %v1116 = vadd.f32 %v1115, %v1053
  %v1117 = vadd.f32 %v1116, %v1054
  %v1118 = vadd.f32 %v1117, %v1055
  %v1119 = vadd.f32 %v1118, %v1056
  %v1120 = vadd.f32 %v1119, %v1057
  %v1121 = vadd.f32 %v1120, %v1058
  %v1122 = vadd.f32 %v1121, %v1059
  %v1123 = vadd.f32 %v1122, %v1060
  %v1124 = vadd.f32 %v1123, %v1061
  %v1125 = vadd.f32 %v1124, %v1062
  %v1126 = vadd.f32 %v1125, %v1063
  %v1127 = vadd.f32 %v1126, %v1064
  %v1128 = vadd.f32 %v1127, %v1065
  %v1129 = vadd.f32 %v1128, %v1066
  %v1130 = vadd.f32 %v1129, %v1067
  %v1131 = vadd.f32 %v1130, %v1068
  %v1132 = vadd.f32 %v1131, %v1069
  %v1133 = vadd.f32 %v1132, %v1070
  %v1134 = vadd.f32 %v1133, %v1071
  %v1135 = vadd.f32 %v1134, %v1072
  %v1136 = vadd.f32 %v1135, %v1073
  %v1137 = vadd.f32 %v1136, %v1074
  %v1138 = vadd.f32 %v1137, %v1075
  %v1139 = vadd.f32 %v1138, %v1076
  %v1140 = vadd.f32 %v1139, %v1077
  %v1141 = vrot.slane %v1140, 4
  %v1142 = vadd.f32 %v1140, %v1141
  %v1143 = vrot.slane %v1142, 2
  %v1144 = vadd.f32 %v1142, %v1143
  %v1145 = vrot.slane %v1144, 1
  %v1146 = vadd.f32 %v1144, %v1145
  %1147 = vst [vmem:[%s3 + $0x1] sm:$0x1] %v1146
  // Predicated region
  $region10: #{conv_bn_forward.2} parent=0 // pred_check
    _
  $region11: #{conv_bn_forward.2} parent=0 // pred_check_branch
    %1149 = sbr.rel (0) target = $region13
  $region12: #{conv_bn_forward.2} parent=0 // pred_region
    _
  $region13: #{conv_bn_forward.2} parent=0 // pred_fallthru
    _
  // Predicated region
  $region14: #{conv_bn_forward.2} parent=0 // pred_check
    _
  $region15: #{conv_bn_forward.2} parent=0 // pred_check_branch
    %1151 = sbr.rel (0) target = $region17
  $region16: #{conv_bn_forward.2} parent=0 // pred_region
    _
  $region17: #{conv_bn_forward.2} parent=0 // pred_fallthru
    _
  // Predicated region
  $region18: #{conv_bn_forward.2} parent=0 // pred_check
    _
  $region19: #{conv_bn_forward.2} parent=0 // pred_check_branch
    %1153 = sbr.rel (0) target = $region21
  $region20: #{conv_bn_forward.2} parent=0 // pred_region
    _
  $region21: #{conv_bn_forward.2} parent=0 // pred_fallthru
    _
  // Predicated region
  $region22: #{conv_bn_forward.2} parent=0 // pred_check
    _
  $region23: #{conv_bn_forward.2} parent=0 // pred_check_branch
    %1155 = sbr.rel (0) target = $region25
  $region24: #{conv_bn_forward.2} parent=0 // pred_region
    _
  $region25: #{conv_bn_forward.2} parent=0 // pred_fallthru
    _

</llo_original>
